<compile_context>
chip_gen: v6e
topology: v6e:2x2x1
jax: 0.10.0
libtpu: 0.0.40
codegen_flags: <defaults>
</compile_context>

<pallas_src>
import jax
import jax.numpy as jnp
from jax import lax
from jax.experimental import pallas as pl
from jax.experimental.pallas import tpu as pltpu  # noqa: F401  (TPU backend)
import numpy as np

IMG_SHAPE = (1, 28, 28)
LATENT_DIM = 100
NUM_CLASSES = 10
IMG_PIXELS = int(np.prod(IMG_SHAPE))      # 784
NOISE_PAD = 128                           # 100 -> 128 (lane aligned)
NC_PAD = 16                               # 10  -> 16  (one-hot width)
OUT_PAD = 896                             # 784 -> 896 = 7*128 (lane aligned)
H1, H2, H3 = 128, 256, 512
BN_EPS = 1e-5
NEG_SLOPE = 0.2

# Packed f32 vector-parameter slab layout.  All offsets are multiples of 128,
# so every in-kernel carve-out is a lane-aligned static view.
_VEC_SLICES = {}
_off = 0
for _name, _width in (("b1", H1), ("b2", H2), ("g2", H2), ("be2", H2),
                      ("b3", H3), ("g3", H3), ("be3", H3), ("b4", OUT_PAD)):
    _VEC_SLICES[_name] = (_off, _off + _width)
    _off += _width
VEC_WIDTH = _off                           # 3328 = 26 * 128


def make_generator_kernel(n_valid: int, b_pad: int):
    """Kernel factory; batch size is static so mask / 1/n are trace-time consts."""
    needs_mask = (b_pad != n_valid)
    inv_n = 1.0 / float(n_valid)

    def kernel(
        lab_ref,                            # (B_pad, 1)   int32  labels (padded rows = 0)
        x_ref,                              # (B_pad, 128) bf16   noise, zero-padded
        w1n_ref,                            # (128, 128)   bf16   W1 noise rows (100 valid)
        w1e_ref,                            # (16, 128)    bf16   emb @ W1 label rows
        w2_ref,                             # (128, 256)   bf16
        w3_ref,                             # (256, 512)   bf16
        w4_ref,                             # (512, 896)   bf16
        vec_ref,                            # (1, 3328)    f32    packed biases / BN params
        out_ref,                            # (B_pad, 896) f32
    ):
        def vp(name):
            lo, hi = _VEC_SLICES[name]
            return vec_ref[:, lo:hi]        # (1, width) f32 static lane-aligned view

        if needs_mask:
            rows = lax.broadcasted_iota(jnp.int32, (b_pad, 1), 0)
            mask = (rows < n_valid).astype(jnp.float32)
        else:
            mask = None

        def bn(h, gamma, beta):
            # Training-mode BatchNorm1d over the *valid* batch rows only.
            if mask is None:
                mean = jnp.mean(h, axis=0, keepdims=True)
                d = h - mean
                var = jnp.mean(d * d, axis=0, keepdims=True)
            else:
                mean = jnp.sum(h * mask, axis=0, keepdims=True) * inv_n
                d = (h - mean) * mask
                var = jnp.sum(d * d, axis=0, keepdims=True) * inv_n
            return (h - mean) * lax.rsqrt(var + BN_EPS) * gamma + beta

        def lrelu(h):
            return jnp.where(h >= 0, h, NEG_SLOPE * h)

        # In-kernel label "gather": one-hot x (16,128) table on the MXU.
        onehot = jnp.where(
            lab_ref[...] == lax.broadcasted_iota(jnp.int32, (b_pad, NC_PAD), 1),
            1.0, 0.0).astype(jnp.bfloat16)

        # Layer 1: Linear(110 -> 128) split into noise part + label-emb part.
        h = (jnp.dot(x_ref[...], w1n_ref[...], preferred_element_type=jnp.float32)
             + jnp.dot(onehot, w1e_ref[...], preferred_element_type=jnp.float32)
             + vp("b1"))
        h = lrelu(h)

        # Linear(128 -> 256) + BatchNorm1d + LeakyReLU
        h = jnp.dot(h.astype(jnp.bfloat16), w2_ref[...],
                    preferred_element_type=jnp.float32) + vp("b2")
        h = lrelu(bn(h, vp("g2"), vp("be2")))

        # Linear(256 -> 512) + BatchNorm1d + LeakyReLU
        h = jnp.dot(h.astype(jnp.bfloat16), w3_ref[...],
                    preferred_element_type=jnp.float32) + vp("b3")
        h = lrelu(bn(h, vp("g3"), vp("be3")))

        # Linear(512 -> 896p) + Tanh
        h = jnp.dot(h.astype(jnp.bfloat16), w4_ref[...],
                    preferred_element_type=jnp.float32) + vp("b4")
        out_ref[...] = jnp.tanh(h)

    return kernel


def _cost_estimate(b_pad: int) -> pl.CostEstimate:
    mxu = NOISE_PAD * H1 + NC_PAD * H1 + H1 * H2 + H2 * H3 + H3 * OUT_PAD
    flops = 2 * b_pad * mxu
    transcendentals = b_pad * OUT_PAD + (H2 + H3)        # tanh per elem, rsqrt per feature
    w_bytes = 2 * mxu                                    # bf16 weights
    vec_bytes = 4 * VEC_WIDTH
    io_bytes = 2 * b_pad * NOISE_PAD + 4 * b_pad + 4 * b_pad * OUT_PAD
    return pl.CostEstimate(flops=flops, transcendentals=transcendentals,
                           bytes_accessed=w_bytes + vec_bytes + io_bytes)


def init_params(key):
    """Synthetic parameters, pre-padded / pre-cast / pre-packed for the kernel."""
    ks = jax.random.split(key, 5)

    def lin(k, fan_in, fan_out):
        bound = 1.0 / np.sqrt(fan_in)
        kw, kb = jax.random.split(k)
        w = jax.random.uniform(kw, (fan_in, fan_out), jnp.float32, -bound, bound)
        b = jax.random.uniform(kb, (fan_out,), jnp.float32, -bound, bound)
        return w, b

    emb = jax.random.normal(ks[0], (NUM_CLASSES, NUM_CLASSES), jnp.float32)
    w1, b1 = lin(ks[1], LATENT_DIM + NUM_CLASSES, H1)
    w2, b2 = lin(ks[2], H1, H2)
    w3, b3 = lin(ks[3], H2, H3)
    w4, b4 = lin(ks[4], H3, IMG_PIXELS)

    # Split layer 1 and fold the label embedding through its weight rows:
    #   x @ W1 = noise @ W1[:100] + emb[labels] @ W1[100:110]
    w1n = jnp.pad(w1[:LATENT_DIM], ((0, NOISE_PAD - LATENT_DIM), (0, 0)))
    w1e = jnp.pad(emb @ w1[LATENT_DIM:], ((0, NC_PAD - NUM_CLASSES), (0, 0)))

    # Lane-pad the final layer 784 -> 896.
    w4p = jnp.pad(w4, ((0, 0), (0, OUT_PAD - IMG_PIXELS)))
    b4p = jnp.pad(b4, (0, OUT_PAD - IMG_PIXELS))

    g2 = jnp.ones((H2,), jnp.float32)
    be2 = jnp.zeros((H2,), jnp.float32)
    g3 = jnp.ones((H3,), jnp.float32)
    be3 = jnp.zeros((H3,), jnp.float32)

    # Single packed f32 slab for all small vector params (one DMA).
    vec = jnp.concatenate([b1, b2, g2, be2, b3, g3, be3, b4p])[None, :]
    assert vec.shape == (1, VEC_WIDTH)

    return dict(
        w1n=w1n.astype(jnp.bfloat16),
        w1e=w1e.astype(jnp.bfloat16),
        w2=w2.astype(jnp.bfloat16),
        w3=w3.astype(jnp.bfloat16),
        w4=w4p.astype(jnp.bfloat16),
        vec=vec,
    )


@jax.jit
def generator_forward(params, noise, labels):
    B = noise.shape[0]
    b_pad = ((B + 7) // 8) * 8                       # sublane-align the batch

    # Minimal wrapper glue (no gather / concat): pad noise to a lane-dense
    # bf16 slab and labels to a (b_pad, 1) int32 column.
    x = jnp.pad(noise.astype(jnp.bfloat16),
                ((0, b_pad - B), (0, NOISE_PAD - LATENT_DIM)))
    lab = jnp.pad(labels.astype(jnp.int32), (0, b_pad - B)).reshape(b_pad, 1)

    flat = pl.pallas_call(
        make_generator_kernel(B, b_pad),
        out_shape=jax.ShapeDtypeStruct((b_pad, OUT_PAD), jnp.float32),
        # No grid: ~1.3 MB bf16 weights + tiny activations fit whole in VMEM,
        # so default full-array BlockSpecs are used; default scoped VMEM is
        # plenty on v5e/v6e/v7x.
        cost_estimate=_cost_estimate(b_pad),
    )(
        lab, x,
        params["w1n"], params["w1e"],
        params["w2"], params["w3"], params["w4"],
        params["vec"],
    )
    return flat[:B, :IMG_PIXELS].reshape(B, *IMG_SHAPE)     # (B, 1, 28, 28)


def _reference_forward(params, noise, labels):
    """Pure-JAX mirror of the kernel math (same bf16 casts, whole-batch BN)."""
    B = noise.shape[0]
    vec = params["vec"][0]

    def vp(name):
        lo, hi = _VEC_SLICES[name]
        return vec[lo:hi][None, :]

    x = jnp.pad(noise.astype(jnp.bfloat16), ((0, 0), (0, NOISE_PAD - LATENT_DIM)))
    # one-hot(bf16) @ table(bf16) with f32 accumulation == exact row gather.
    emb_contrib = params["w1e"][labels].astype(jnp.float32)

    def dot(a, w):
        return jnp.dot(a.astype(jnp.bfloat16), w,
                       preferred_element_type=jnp.float32)

    def bn(h, g, b):
        m = jnp.mean(h, axis=0, keepdims=True)
        v = jnp.mean((h - m) ** 2, axis=0, keepdims=True)
        return (h - m) * lax.rsqrt(v + BN_EPS) * g + b

    def lrelu(h):
        return jnp.where(h >= 0, h, NEG_SLOPE * h)

    h = lrelu(dot(x, params["w1n"]) + emb_contrib + vp("b1"))
    h = lrelu(bn(dot(h, params["w2"]) + vp("b2"), vp("g2"), vp("be2")))
    h = lrelu(bn(dot(h, params["w3"]) + vp("b3"), vp("g3"), vp("be3")))
    h = jnp.tanh(dot(h, params["w4"]) + vp("b4"))
    return h[:, :IMG_PIXELS].reshape(B, *IMG_SHAPE)


if __name__ == "__main__":
    key = jax.random.PRNGKey(0)
    kp, kn, kl = jax.random.split(key, 3)

    B = 8
    params = init_params(kp)
    noise = jax.random.normal(kn, (B, LATENT_DIM), jnp.float32)
    labels = jax.random.randint(kl, (B,), 0, NUM_CLASSES, jnp.int32)

    img = generator_forward(params, noise, labels)
    jax.block_until_ready(img)

    assert img.shape == (B, *IMG_SHAPE), img.shape

    ref = _reference_forward(params, noise, labels)
    np.testing.assert_allclose(np.asarray(img), np.asarray(ref),
                               rtol=2e-2, atol=2e-2)

    print("KERNEL_OK")
</pallas_src>

<mosaic_0001>
module attributes {stable_mosaic.version = 11 : i64} {
  func.func @kernel(%arg0: memref<8x1xi32, #tpu.memory_space<vmem>>, %arg1: memref<8x128xbf16, #tpu.memory_space<vmem>>, %arg2: memref<128x128xbf16, #tpu.memory_space<vmem>>, %arg3: memref<16x128xbf16, #tpu.memory_space<vmem>>, %arg4: memref<128x256xbf16, #tpu.memory_space<vmem>>, %arg5: memref<256x512xbf16, #tpu.memory_space<vmem>>, %arg6: memref<512x896xbf16, #tpu.memory_space<vmem>>, %arg7: memref<1x3328xf32, #tpu.memory_space<vmem>>, %arg8: memref<8x896xf32, #tpu.memory_space<vmem>>) attributes {dimension_semantics = [], scalar_prefetch = 0 : i64, scratch_operands = 0 : i64, tpu.core_type = #tpu.core_type<tc>} {
    %c0 = arith.constant 0 : index
    %c0_0 = arith.constant 0 : index
    %0 = vector.load %arg0[%c0, %c0_0] : memref<8x1xi32, #tpu.memory_space<vmem>>, vector<8x1xi32>
    %1 = tpu.iota {dimensions = array<i32: 1>} : vector<8x16xi32>
    %2 = vector.broadcast %0 : vector<8x1xi32> to vector<8x16xi32>
    %3 = arith.cmpi eq, %2, %1 : vector<8x16xi32>
    %cst = arith.constant 1.000000e+00 : f32
    %cst_1 = arith.constant 0.000000e+00 : f32
    %4 = vector.broadcast %cst : f32 to vector<8x16xf32>
    %5 = vector.broadcast %cst_1 : f32 to vector<8x16xf32>
    %6 = arith.select %3, %4, %5 : vector<8x16xi1>, vector<8x16xf32>
    %7 = arith.truncf %6 : vector<8x16xf32> to vector<8x16xbf16>
    %c0_2 = arith.constant 0 : index
    %c0_3 = arith.constant 0 : index
    %8 = vector.load %arg1[%c0_2, %c0_3] : memref<8x128xbf16, #tpu.memory_space<vmem>>, vector<8x128xbf16>
    %c0_4 = arith.constant 0 : index
    %c0_5 = arith.constant 0 : index
    %9 = vector.load %arg2[%c0_4, %c0_5] : memref<128x128xbf16, #tpu.memory_space<vmem>>, vector<128x128xbf16>
    %cst_6 = arith.constant dense<0.000000e+00> : vector<8x128xf32>
    %10 = tpu.matmul %8, %9, %cst_6 {dimension_numbers = #tpu.dot_dimension_numbers<[1], [0], [0], [1], [0, 0, 1, 1], [], []>} : vector<8x128xbf16>, vector<128x128xbf16>, vector<8x128xf32> -> vector<8x128xf32>
    %c0_7 = arith.constant 0 : index
    %c0_8 = arith.constant 0 : index
    %11 = vector.load %arg3[%c0_7, %c0_8] : memref<16x128xbf16, #tpu.memory_space<vmem>>, vector<16x128xbf16>
    %cst_9 = arith.constant dense<0.000000e+00> : vector<8x128xf32>
    %12 = tpu.matmul %7, %11, %cst_9 {dimension_numbers = #tpu.dot_dimension_numbers<[1], [0], [0], [1], [0, 0, 1, 1], [], []>} : vector<8x16xbf16>, vector<16x128xbf16>, vector<8x128xf32> -> vector<8x128xf32>
    %13 = arith.addf %10, %12 : vector<8x128xf32>
    %c0_10 = arith.constant 0 : index
    %c0_11 = arith.constant 0 : index
    %14 = vector.load %arg7[%c0_10, %c0_11] : memref<1x3328xf32, #tpu.memory_space<vmem>>, vector<1x128xf32>
    %15 = vector.broadcast %14 : vector<1x128xf32> to vector<8x128xf32>
    %16 = arith.addf %13, %15 : vector<8x128xf32>
    %cst_12 = arith.constant 0.000000e+00 : f32
    %17 = vector.broadcast %cst_12 : f32 to vector<8x128xf32>
    %18 = arith.cmpf oge, %16, %17 : vector<8x128xf32>
    %cst_13 = arith.constant 2.000000e-01 : f32
    %19 = vector.broadcast %cst_13 : f32 to vector<8x128xf32>
    %20 = arith.mulf %19, %16 : vector<8x128xf32>
    %21 = arith.select %18, %16, %20 : vector<8x128xi1>, vector<8x128xf32>
    %22 = arith.truncf %21 : vector<8x128xf32> to vector<8x128xbf16>
    %c0_14 = arith.constant 0 : index
    %c0_15 = arith.constant 0 : index
    %23 = vector.load %arg4[%c0_14, %c0_15] : memref<128x256xbf16, #tpu.memory_space<vmem>>, vector<128x256xbf16>
    %cst_16 = arith.constant dense<0.000000e+00> : vector<8x256xf32>
    %24 = tpu.matmul %22, %23, %cst_16 {dimension_numbers = #tpu.dot_dimension_numbers<[1], [0], [0], [1], [0, 0, 1, 1], [], []>} : vector<8x128xbf16>, vector<128x256xbf16>, vector<8x256xf32> -> vector<8x256xf32>
    %c0_17 = arith.constant 0 : index
    %c128 = arith.constant 128 : index
    %25 = vector.load %arg7[%c0_17, %c128] : memref<1x3328xf32, #tpu.memory_space<vmem>>, vector<1x256xf32>
    %26 = vector.broadcast %25 : vector<1x256xf32> to vector<8x256xf32>
    %27 = arith.addf %24, %26 : vector<8x256xf32>
    %c0_18 = arith.constant 0 : index
    %c384 = arith.constant 384 : index
    %28 = vector.load %arg7[%c0_18, %c384] : memref<1x3328xf32, #tpu.memory_space<vmem>>, vector<1x256xf32>
    %c0_19 = arith.constant 0 : index
    %c640 = arith.constant 640 : index
    %29 = vector.load %arg7[%c0_19, %c640] : memref<1x3328xf32, #tpu.memory_space<vmem>>, vector<1x256xf32>
    %cst_20 = arith.constant dense<0.000000e+00> : vector<256xf32>
    %30 = vector.multi_reduction <add>, %27, %cst_20 [0] : vector<8x256xf32> to vector<256xf32>
    %31 = vector.shape_cast %30 : vector<256xf32> to vector<1x256xf32>
    %cst_21 = arith.constant 8.000000e+00 : f32
    %32 = vector.broadcast %cst_21 : f32 to vector<1x256xf32>
    %33 = arith.divf %31, %32 : vector<1x256xf32>
    %34 = vector.broadcast %33 : vector<1x256xf32> to vector<8x256xf32>
    %35 = arith.subf %27, %34 : vector<8x256xf32>
    %36 = arith.mulf %35, %35 : vector<8x256xf32>
    %cst_22 = arith.constant dense<0.000000e+00> : vector<256xf32>
    %37 = vector.multi_reduction <add>, %36, %cst_22 [0] : vector<8x256xf32> to vector<256xf32>
    %38 = vector.shape_cast %37 : vector<256xf32> to vector<1x256xf32>
    %cst_23 = arith.constant 8.000000e+00 : f32
    %39 = vector.broadcast %cst_23 : f32 to vector<1x256xf32>
    %40 = arith.divf %38, %39 : vector<1x256xf32>
    %41 = vector.broadcast %33 : vector<1x256xf32> to vector<8x256xf32>
    %42 = arith.subf %27, %41 : vector<8x256xf32>
    %cst_24 = arith.constant 9.99999974E-6 : f32
    %43 = vector.broadcast %cst_24 : f32 to vector<1x256xf32>
    %44 = arith.addf %40, %43 : vector<1x256xf32>
    %45 = math.rsqrt %44 : vector<1x256xf32>
    %46 = vector.broadcast %45 : vector<1x256xf32> to vector<8x256xf32>
    %47 = arith.mulf %42, %46 : vector<8x256xf32>
    %48 = vector.broadcast %28 : vector<1x256xf32> to vector<8x256xf32>
    %49 = arith.mulf %47, %48 : vector<8x256xf32>
    %50 = vector.broadcast %29 : vector<1x256xf32> to vector<8x256xf32>
    %51 = arith.addf %49, %50 : vector<8x256xf32>
    %cst_25 = arith.constant 0.000000e+00 : f32
    %52 = vector.broadcast %cst_25 : f32 to vector<8x256xf32>
    %53 = arith.cmpf oge, %51, %52 : vector<8x256xf32>
    %cst_26 = arith.constant 2.000000e-01 : f32
    %54 = vector.broadcast %cst_26 : f32 to vector<8x256xf32>
    %55 = arith.mulf %54, %51 : vector<8x256xf32>
    %56 = arith.select %53, %51, %55 : vector<8x256xi1>, vector<8x256xf32>
    %57 = arith.truncf %56 : vector<8x256xf32> to vector<8x256xbf16>
    %c0_27 = arith.constant 0 : index
    %c0_28 = arith.constant 0 : index
    %58 = vector.load %arg5[%c0_27, %c0_28] : memref<256x512xbf16, #tpu.memory_space<vmem>>, vector<256x512xbf16>
    %cst_29 = arith.constant dense<0.000000e+00> : vector<8x512xf32>
    %59 = tpu.matmul %57, %58, %cst_29 {dimension_numbers = #tpu.dot_dimension_numbers<[1], [0], [0], [1], [0, 0, 1, 1], [], []>} : vector<8x256xbf16>, vector<256x512xbf16>, vector<8x512xf32> -> vector<8x512xf32>
    %c0_30 = arith.constant 0 : index
    %c896 = arith.constant 896 : index
    %60 = vector.load %arg7[%c0_30, %c896] : memref<1x3328xf32, #tpu.memory_space<vmem>>, vector<1x512xf32>
    %61 = vector.broadcast %60 : vector<1x512xf32> to vector<8x512xf32>
    %62 = arith.addf %59, %61 : vector<8x512xf32>
    %c0_31 = arith.constant 0 : index
    %c1408 = arith.constant 1408 : index
    %63 = vector.load %arg7[%c0_31, %c1408] : memref<1x3328xf32, #tpu.memory_space<vmem>>, vector<1x512xf32>
    %c0_32 = arith.constant 0 : index
    %c1920 = arith.constant 1920 : index
    %64 = vector.load %arg7[%c0_32, %c1920] : memref<1x3328xf32, #tpu.memory_space<vmem>>, vector<1x512xf32>
    %cst_33 = arith.constant dense<0.000000e+00> : vector<512xf32>
    %65 = vector.multi_reduction <add>, %62, %cst_33 [0] : vector<8x512xf32> to vector<512xf32>
    %66 = vector.shape_cast %65 : vector<512xf32> to vector<1x512xf32>
    %cst_34 = arith.constant 8.000000e+00 : f32
    %67 = vector.broadcast %cst_34 : f32 to vector<1x512xf32>
    %68 = arith.divf %66, %67 : vector<1x512xf32>
    %69 = vector.broadcast %68 : vector<1x512xf32> to vector<8x512xf32>
    %70 = arith.subf %62, %69 : vector<8x512xf32>
    %71 = arith.mulf %70, %70 : vector<8x512xf32>
    %cst_35 = arith.constant dense<0.000000e+00> : vector<512xf32>
    %72 = vector.multi_reduction <add>, %71, %cst_35 [0] : vector<8x512xf32> to vector<512xf32>
    %73 = vector.shape_cast %72 : vector<512xf32> to vector<1x512xf32>
    %cst_36 = arith.constant 8.000000e+00 : f32
    %74 = vector.broadcast %cst_36 : f32 to vector<1x512xf32>
    %75 = arith.divf %73, %74 : vector<1x512xf32>
    %76 = vector.broadcast %68 : vector<1x512xf32> to vector<8x512xf32>
    %77 = arith.subf %62, %76 : vector<8x512xf32>
    %cst_37 = arith.constant 9.99999974E-6 : f32
    %78 = vector.broadcast %cst_37 : f32 to vector<1x512xf32>
    %79 = arith.addf %75, %78 : vector<1x512xf32>
    %80 = math.rsqrt %79 : vector<1x512xf32>
    %81 = vector.broadcast %80 : vector<1x512xf32> to vector<8x512xf32>
    %82 = arith.mulf %77, %81 : vector<8x512xf32>
    %83 = vector.broadcast %63 : vector<1x512xf32> to vector<8x512xf32>
    %84 = arith.mulf %82, %83 : vector<8x512xf32>
    %85 = vector.broadcast %64 : vector<1x512xf32> to vector<8x512xf32>
    %86 = arith.addf %84, %85 : vector<8x512xf32>
    %cst_38 = arith.constant 0.000000e+00 : f32
    %87 = vector.broadcast %cst_38 : f32 to vector<8x512xf32>
    %88 = arith.cmpf oge, %86, %87 : vector<8x512xf32>
    %cst_39 = arith.constant 2.000000e-01 : f32
    %89 = vector.broadcast %cst_39 : f32 to vector<8x512xf32>
    %90 = arith.mulf %89, %86 : vector<8x512xf32>
    %91 = arith.select %88, %86, %90 : vector<8x512xi1>, vector<8x512xf32>
    %92 = arith.truncf %91 : vector<8x512xf32> to vector<8x512xbf16>
    %c0_40 = arith.constant 0 : index
    %c0_41 = arith.constant 0 : index
    %93 = vector.load %arg6[%c0_40, %c0_41] : memref<512x896xbf16, #tpu.memory_space<vmem>>, vector<512x896xbf16>
    %cst_42 = arith.constant dense<0.000000e+00> : vector<8x896xf32>
    %94 = tpu.matmul %92, %93, %cst_42 {dimension_numbers = #tpu.dot_dimension_numbers<[1], [0], [0], [1], [0, 0, 1, 1], [], []>} : vector<8x512xbf16>, vector<512x896xbf16>, vector<8x896xf32> -> vector<8x896xf32>
    %c0_43 = arith.constant 0 : index
    %c2432 = arith.constant 2432 : index
    %95 = vector.load %arg7[%c0_43, %c2432] : memref<1x3328xf32, #tpu.memory_space<vmem>>, vector<1x896xf32>
    %96 = vector.broadcast %95 : vector<1x896xf32> to vector<8x896xf32>
    %97 = arith.addf %94, %96 : vector<8x896xf32>
    %98 = math.tanh %97 : vector<8x896xf32>
    %c0_44 = arith.constant 0 : index
    %c0_45 = arith.constant 0 : index
    %99 = vector.load %arg8[%c0_44, %c0_45] : memref<8x896xf32, #tpu.memory_space<vmem>>, vector<8x896xf32>
    tpu.vector_store %arg8[%c0_44, %c0_45], %98 {strides = array<i32>} : memref<8x896xf32, #tpu.memory_space<vmem>>, vector<8x896xf32>,
    return
  }
}

</mosaic_0001>

<llo_original>
// kernel: generator_forward.1
$region0: #{generator_forward.1}
  #allocation0 [shape = 'u32[]', space=smem, size = 0x4, offset = 0x4, fixed_abs, tag = 'smem constant byte address 0x4 - core index']
  #allocation1 [shape = 'u32[144,128]{1,0:T(1,128)}', space=vmem, size = 0x12000, scoped, tag = 'internal scratch']
  %s0 = inlined_call_operand.vmem [shape: s32[8,1], index: 0, kind: input, shape index: {}]
  %s1 = inlined_call_operand.vmem [shape: bf16[8,128], index: 1, kind: input, shape index: {}]
  %s2 = inlined_call_operand.hbm [shape: bf16[128,128], index: 2, kind: input, shape index: {}]
  %s3 = inlined_call_operand.hbm [shape: bf16[16,128], index: 3, kind: input, shape index: {}]
  %s4 = inlined_call_operand.hbm [shape: bf16[128,256], index: 4, kind: input, shape index: {}]
  %s5 = inlined_call_operand.hbm [shape: bf16[256,512], index: 5, kind: input, shape index: {}]
  %s6 = inlined_call_operand.hbm [shape: bf16[512,896], index: 6, kind: input, shape index: {}]
  %s7 = inlined_call_operand.vmem [shape: f32[1,3328], index: 7, kind: input, shape index: {}]
  %s8 = inlined_call_operand.vmem [shape: f32[8,896], index: 8, kind: output, shape index: {}]
  %s9 = sld [smem:[#allocation0]]
  $region62: #{generator_forward.1} parent=0
    _
  %s11 = ssub.s32 1, %s9
  %s12 = scalar_select 0, %s11, %s9
  $region1: #{generator_forward.1} parent=0
    #allocation2 [shape = 'u8[32768]{0}', space=vmem, size = 0x8000, scoped, tag = 'input window, operand 2, single buffered']
    #allocation3 [shape = 's32[1]{0}', space=sflag, size = 0x4, scoped, tag = 'scoped memory for generator_forward.1']
    #allocation4 [shape = 'u8[4096]{0}', space=vmem, size = 0x1000, scoped, tag = 'input window, operand 3, single buffered']
    #allocation5 [shape = 's32[1]{0}', space=sflag, size = 0x4, scoped, tag = 'scoped memory for generator_forward.1']
    #allocation6 [shape = 'u8[65536]{0}', space=vmem, size = 0x10000, scoped, tag = 'input window, operand 4, single buffered']
    #allocation7 [shape = 'u8[262144]{0}', space=vmem, size = 0x40000, scoped, tag = 'input window, operand 5, single buffered']
    #allocation8 [shape = 's32[1]{0}', space=sflag, size = 0x4, scoped, tag = 'scoped memory for generator_forward.1']
    #allocation9 [shape = 'u8[917504]{0}', space=vmem, size = 0xe0000, scoped, tag = 'input window, operand 6, single buffered']
    %13 = vsyncpa [#allocation3], 0
    %14 = vsyncpa [#allocation5], 0
    %15 = vsyncpa [#allocation8], 0
    // Predicated region
    $region2: #{generator_forward.1} parent=1 // pred_check
      _
    $region3: #{generator_forward.1} parent=1 // pred_check_branch
      %17 = sbr.rel (0) target = $region5
    $region4: #{generator_forward.1} parent=1 // pred_region
      _
    $region5: #{generator_forward.1} parent=1 // pred_fallthru
      _
    // Predicated region
    $region6: #{generator_forward.1} parent=1 // pred_check
      _
    $region7: #{generator_forward.1} parent=1 // pred_check_branch
      %19 = sbr.rel (0) target = $region9
    $region8: #{generator_forward.1} parent=1 // pred_region
      _
    $region9: #{generator_forward.1} parent=1 // pred_fallthru
      _
    // Predicated region
    $region10: #{generator_forward.1} parent=1 // pred_check
      _
    $region11: #{generator_forward.1} parent=1 // pred_check_branch
      %21 = sbr.rel (0) target = $region13
    $region12: #{generator_forward.1} parent=1 // pred_region
      %s23 = ssub.s32 1024, 1024
      %24 = vsyncadd [#allocation3], %s23
      %s25 = sshll.u32 [#allocation2], 4
      %s26 = int_to_ptr.vmem [resolvable:$true] %s25
      %31 = dma.hbm_to_vmem [thread:$0]  %s2, 1024, %s26, [#allocation3], 64, 64, 4
    $region13: #{generator_forward.1} parent=1 // pred_fallthru
      _
    // Predicated region
    $region14: #{generator_forward.1} parent=1 // pred_check
      _
    $region15: #{generator_forward.1} parent=1 // pred_check_branch
      %33 = sbr.rel (0) target = $region17
    $region16: #{generator_forward.1} parent=1 // pred_region
      %s35 = ssub.s32 128, 128
      %36 = vsyncadd [#allocation5], %s35
      %s37 = sshll.u32 [#allocation4], 4
      %s38 = int_to_ptr.vmem [resolvable:$true] %s37
      %43 = dma.hbm_to_vmem [thread:$0]  %s3, 128, %s38, [#allocation5], 64, 64, 4
    $region17: #{generator_forward.1} parent=1 // pred_fallthru
      _
    // Predicated region
    $region18: #{generator_forward.1} parent=1 // pred_check
      _
    $region19: #{generator_forward.1} parent=1 // pred_check_branch
      %45 = sbr.rel (0) target = $region21
    $region20: #{generator_forward.1} parent=1 // pred_region
      %s47 = ssub.s32 2048, 2048
      %48 = vsyncadd [#allocation5], %s47
      %s49 = sshll.u32 [#allocation6], 4
      %s50 = int_to_ptr.vmem [resolvable:$true] %s49
      %55 = dma.hbm_to_vmem [thread:$0]  %s4, 2048, %s50, [#allocation5], 128, 128, 8
    $region21: #{generator_forward.1} parent=1 // pred_fallthru
      _
    // Predicated region
    $region22: #{generator_forward.1} parent=1 // pred_check
      _
    $region23: #{generator_forward.1} parent=1 // pred_check_branch
      %57 = sbr.rel (0) target = $region25
    $region24: #{generator_forward.1} parent=1 // pred_region
      %s59 = ssub.s32 8192, 8192
      %60 = vsyncadd [#allocation8], %s59
      %s61 = sshll.u32 [#allocation7], 4
      %s62 = int_to_ptr.vmem [resolvable:$true] %s61
      %67 = dma.hbm_to_vmem [thread:$0]  %s5, 8192, %s62, [#allocation8], 256, 256, 16
    $region25: #{generator_forward.1} parent=1 // pred_fallthru
      _
    // Predicated region
    $region26: #{generator_forward.1} parent=1 // pred_check
      _
    $region27: #{generator_forward.1} parent=1 // pred_check_branch
      %69 = sbr.rel (0) target = $region29
    $region28: #{generator_forward.1} parent=1 // pred_region
      %s71 = ssub.s32 28672, 28672
      %72 = vsyncadd [#allocation8], %s71
      %s73 = sshll.u32 [#allocation9], 4
      %s74 = int_to_ptr.vmem [resolvable:$true] %s73
      %79 = dma.hbm_to_vmem [thread:$0]  %s6, 28672, %s74, [#allocation8], 448, 448, 28
    $region29: #{generator_forward.1} parent=1 // pred_fallthru
      _
    // Predicated region
    $region30: #{generator_forward.1} parent=1 // pred_check
      _
    $region31: #{generator_forward.1} parent=1 // pred_check_branch
      %81 = sbr.rel (0) target = $region33
    $region32: #{generator_forward.1} parent=1 // pred_region
      _
    $region33: #{generator_forward.1} parent=1 // pred_fallthru
      _
    // Predicated region
    $region34: #{generator_forward.1} parent=1 // pred_check
      _
    $region35: #{generator_forward.1} parent=1 // pred_check_branch
      %83 = sbr.rel (0) target = $region37
    $region36: #{generator_forward.1} parent=1 // pred_region
      %84 = dma.done [#allocation3], 1024
    $region37: #{generator_forward.1} parent=1 // pred_fallthru
      _
    // Predicated region
    $region38: #{generator_forward.1} parent=1 // pred_check
      _
    $region39: #{generator_forward.1} parent=1 // pred_check_branch
      %86 = sbr.rel (0) target = $region41
    $region40: #{generator_forward.1} parent=1 // pred_region
      %87 = dma.done [#allocation5], 128
    $region41: #{generator_forward.1} parent=1 // pred_fallthru
      _
    // Predicated region
    $region42: #{generator_forward.1} parent=1 // pred_check
      _
    $region43: #{generator_forward.1} parent=1 // pred_check_branch
      %89 = sbr.rel (0) target = $region45
    $region44: #{generator_forward.1} parent=1 // pred_region
      %90 = dma.done [#allocation5], 2048
    $region45: #{generator_forward.1} parent=1 // pred_fallthru
      _
    // Predicated region
    $region46: #{generator_forward.1} parent=1 // pred_check
      _
    $region47: #{generator_forward.1} parent=1 // pred_check_branch
      %92 = sbr.rel (0) target = $region49
    $region48: #{generator_forward.1} parent=1 // pred_region
      %93 = dma.done [#allocation8], 8192
    $region49: #{generator_forward.1} parent=1 // pred_fallthru
      _
    // Predicated region
    $region50: #{generator_forward.1} parent=1 // pred_check
      _
    $region51: #{generator_forward.1} parent=1 // pred_check_branch
      %95 = sbr.rel (0) target = $region53
    $region52: #{generator_forward.1} parent=1 // pred_region
      %96 = dma.done [#allocation8], 28672
    $region53: #{generator_forward.1} parent=1 // pred_fallthru
      _
    %v98 = vld [vmem:[%s0] sm:$0xff]
    %v99 = vlaneseq
    %v100 = vand.u32 %v99, 127
    %101 = vset.pattern.permute.xlu0 0
    %102 = vperm.xlu0 %101, %v98
    %v103 = vpop.permute.xlu0 %102
    %vm104 = vcmp.eq.s32.totalorder %v103, %v100
    %v105 = vsel %vm104, 1.0, 0.0
    %v106 = vpack.c.bf16 %v105, %v105
    %v107 = vld [vmem:[%s1] sm:$0xf]
    %v108 = vld [vmem:[#allocation2] sm:$0xf]
    %v109 = vld [vmem:[#allocation2 + $0x4] sm:$0xf]
    %v110 = vld [vmem:[#allocation2 + $0x8] sm:$0xf]
    %v111 = vld [vmem:[#allocation2 + $0xc] sm:$0xf]
    %v112 = vld [vmem:[#allocation2 + $0x10] sm:$0xf]
    %v113 = vld [vmem:[#allocation2 + $0x14] sm:$0xf]
    %v114 = vld [vmem:[#allocation2 + $0x18] sm:$0xf]
    %v115 = vld [vmem:[#allocation2 + $0x1c] sm:$0xf]
    %v116 = vld [vmem:[#allocation2 + $0x20] sm:$0xf]
    %v117 = vld [vmem:[#allocation2 + $0x24] sm:$0xf]
    %v118 = vld [vmem:[#allocation2 + $0x28] sm:$0xf]
    %v119 = vld [vmem:[#allocation2 + $0x2c] sm:$0xf]
    %v120 = vld [vmem:[#allocation2 + $0x30] sm:$0xf]
    %v121 = vld [vmem:[#allocation2 + $0x34] sm:$0xf]
    %v122 = vld [vmem:[#allocation2 + $0x38] sm:$0xf]
    %v123 = vld [vmem:[#allocation2 + $0x3c] sm:$0xf]
    %v124 = vld [vmem:[#allocation4] sm:$0xf]
    %v125 = vld [vmem:[#allocation4 + $0x4] sm:$0xf]
    %v128 = vunpack.c.l.b16 %v124
    %v129 = vunpack.c.l.b16 %v125
    %v130 = vpack.c.b16 %v129, %v128
    %vm132 = vcmask 130048
    %v134 = vsel %vm132, %v106, 0
    %136 = vmatprep.subr.bf16.mxu0 0
    %137 = vmatpush1.bf16.msra.mxu0 0
    %138 = vmatprep.subr.bf16.mxu0 0
    %139 = vmatpush1.bf16.msra.mxu0 0
    %140 = vmatprep.subr.bf16.mxu0 0
    %141 = vmatpush1.bf16.msra.mxu0 0
    %142 = vmatprep.subr.bf16.mxu0 0
    %143 = vmatpush1.bf16.msra.mxu0 0
    %144 = vmatprep.subr.bf16.mxu0 0
    %145 = vmatpush1.bf16.msra.mxu0 0
    %146 = vmatprep.subr.bf16.mxu0 0
    %147 = vmatpush1.bf16.msra.mxu0 0
    %148 = vmatprep.subr.bf16.mxu0 0
    %149 = vmatpush1.bf16.msra.mxu0 0
    %150 = vmatprep.subr.bf16.mxu0 0
    %151 = vmatpush1.bf16.msra.mxu0 %v130
    %152 = vmatprep.subr.bf16.mxu0 0
    %153 = vmatpush2.bf16.msra.mxu0 0
    %154 = vmatprep.subr.bf16.mxu0 0
    %155 = vmatpush2.bf16.msra.mxu0 0
    %156 = vmatprep.subr.bf16.mxu0 0
    %157 = vmatpush2.bf16.msra.mxu0 0
    %158 = vmatprep.subr.bf16.mxu0 0
    %159 = vmatpush2.bf16.msra.mxu0 0
    %160 = vmatprep.subr.bf16.mxu0 0
    %161 = vmatpush2.bf16.msra.mxu0 0
    %162 = vmatprep.subr.bf16.mxu0 0
    %163 = vmatpush2.bf16.msra.mxu0 0
    %164 = vmatprep.subr.bf16.mxu0 0
    %165 = vmatpush2.bf16.msra.mxu0 0
    %166 = vmatprep.subr.bf16.mxu0 0
    %167 = vmatpush2.bf16.msra.mxu0 0
    %168 = vmatprep.mubr.bf16.mxu0 0
    %169 = vmatmul.mubr.bf16.gmra.mxu0 %v134
    %v170 = vpop.f32.mrf.mxu0
    %v171 = vadd.f32 0.0, %v170
    %v172 = vpop.f32.mrf.mxu0
    %v173 = vpop.f32.mrf.mxu0
    %v174 = vpop.f32.mrf.mxu0
    %175 = vdwg.mxu0
    %v192 = vunpack.c.l.b16 %v108
    %v193 = vunpack.c.l.b16 %v109
    %v194 = vunpack.c.l.b16 %v110
    %v195 = vunpack.c.l.b16 %v111
    %v196 = vunpack.c.l.b16 %v112
    %v197 = vunpack.c.l.b16 %v113
    %v198 = vunpack.c.l.b16 %v114
    %v199 = vunpack.c.l.b16 %v115
    %v200 = vunpack.c.l.b16 %v116
    %v201 = vunpack.c.l.b16 %v117
    %v202 = vunpack.c.l.b16 %v118
    %v203 = vunpack.c.l.b16 %v119
    %v204 = vunpack.c.l.b16 %v120
    %v205 = vunpack.c.l.b16 %v121
    %v206 = vunpack.c.l.b16 %v122
    %v207 = vunpack.c.l.b16 %v123
    %v208 = vpack.c.b16 %v193, %v192
    %v209 = vpack.c.b16 %v195, %v194
    %v210 = vpack.c.b16 %v197, %v196
    %v211 = vpack.c.b16 %v199, %v198
    %v212 = vpack.c.b16 %v201, %v200
    %v213 = vpack.c.b16 %v203, %v202
    %v214 = vpack.c.b16 %v205, %v204
    %v215 = vpack.c.b16 %v207, %v206
    %224 = vmatprep.subr.bf16.mxu0 0
    %225 = vmatpush1.bf16.msra.mxu0 %v215
    %226 = vmatprep.subr.bf16.mxu0 0
    %227 = vmatpush1.bf16.msra.mxu0 %v214
    %228 = vmatprep.subr.bf16.mxu0 0
    %229 = vmatpush1.bf16.msra.mxu0 %v213
    %230 = vmatprep.subr.bf16.mxu0 0
    %231 = vmatpush1.bf16.msra.mxu0 %v212
    %232 = vmatprep.subr.bf16.mxu0 0
    %233 = vmatpush1.bf16.msra.mxu0 %v211
    %234 = vmatprep.subr.bf16.mxu0 0
    %235 = vmatpush1.bf16.msra.mxu0 %v210
    %236 = vmatprep.subr.bf16.mxu0 0
    %237 = vmatpush1.bf16.msra.mxu0 %v209
    %238 = vmatprep.subr.bf16.mxu0 0
    %239 = vmatpush1.bf16.msra.mxu0 %v208
    %240 = vmatprep.subr.bf16.mxu0 0
    %241 = vmatpush2.bf16.msra.mxu0 0
    %242 = vmatprep.subr.bf16.mxu0 0
    %243 = vmatpush2.bf16.msra.mxu0 0
    %244 = vmatprep.subr.bf16.mxu0 0
    %245 = vmatpush2.bf16.msra.mxu0 0
    %246 = vmatprep.subr.bf16.mxu0 0
    %247 = vmatpush2.bf16.msra.mxu0 0
    %248 = vmatprep.subr.bf16.mxu0 0
    %249 = vmatpush2.bf16.msra.mxu0 0
    %250 = vmatprep.subr.bf16.mxu0 0
    %251 = vmatpush2.bf16.msra.mxu0 0
    %252 = vmatprep.subr.bf16.mxu0 0
    %253 = vmatpush2.bf16.msra.mxu0 0
    %254 = vmatprep.subr.bf16.mxu0 0
    %255 = vmatpush2.bf16.msra.mxu0 0
    %256 = vmatprep.mubr.bf16.mxu0 0
    %257 = vmatmul.mubr.bf16.gmra.mxu0 %v107
    %v258 = vpop.f32.mrf.mxu0
    %v259 = vadd.f32 %v171, %v258
    %v260 = vpop.f32.mrf.mxu0
    %v261 = vpop.f32.mrf.mxu0
    %v262 = vpop.f32.mrf.mxu0
    %263 = vdwg.mxu0
    %v264 = vld [vmem:[%s7] sm:$0x1]
    %v266 = vlaneseq
    %v267 = vshrl.u32 %v266, 7
    %v268 = vsub.s32 0, %v267
    %v269 = vrot.slane %v264, %v268
    %v271 = vadd.f32 %v259, %v269
    %vm272 = vcmp.ge.f32.partialorder %v271, 0.0
    %v273 = vmul.f32 %v271, 0.2
    %v274 = vsel %vm272, %v271, %v273
    %v275 = vpack.c.bf16 %v274, %v274
    %v276 = vld [vmem:[#allocation6] sm:$0xff]
    %v277 = vld [vmem:[#allocation6 + $0x8] sm:$0xff]
    %v278 = vld [vmem:[#allocation6 + $0x10] sm:$0xff]
    %v279 = vld [vmem:[#allocation6 + $0x18] sm:$0xff]
    %v280 = vld [vmem:[#allocation6 + $0x20] sm:$0xff]
    %v281 = vld [vmem:[#allocation6 + $0x28] sm:$0xff]
    %v282 = vld [vmem:[#allocation6 + $0x30] sm:$0xff]
    %v283 = vld [vmem:[#allocation6 + $0x38] sm:$0xff]
    %v284 = vld [vmem:[#allocation6 + $0x40] sm:$0xff]
    %v285 = vld [vmem:[#allocation6 + $0x48] sm:$0xff]
    %v286 = vld [vmem:[#allocation6 + $0x50] sm:$0xff]
    %v287 = vld [vmem:[#allocation6 + $0x58] sm:$0xff]
    %v288 = vld [vmem:[#allocation6 + $0x60] sm:$0xff]
    %v289 = vld [vmem:[#allocation6 + $0x68] sm:$0xff]
    %v290 = vld [vmem:[#allocation6 + $0x70] sm:$0xff]
    %v291 = vld [vmem:[#allocation6 + $0x78] sm:$0xff]
    %v292 = vld [vmem:[%s7 + $0x1] sm:$0x3]
    %v294 = vlaneseq
    %v295 = vshrl.u32 %v294, 7
    %v296 = vsub.s32 0, %v295
    %v297 = vrot.slane %v292, %v296
    %v298 = vlaneseq
    %v299 = vshrl.u32 %v298, 7
    %v300 = vsub.s32 1, %v299
    %v301 = vrot.slane %v292, %v300
    %v320 = vunpack.c.l.b16 %v276
    %v321 = vunpack.c.h.b16 %v276
    %v322 = vunpack.c.l.b16 %v277
    %v323 = vunpack.c.h.b16 %v277
    %v324 = vunpack.c.l.b16 %v278
    %v325 = vunpack.c.h.b16 %v278
    %v326 = vunpack.c.l.b16 %v279
    %v327 = vunpack.c.h.b16 %v279
    %v328 = vunpack.c.l.b16 %v280
    %v329 = vunpack.c.h.b16 %v280
    %v330 = vunpack.c.l.b16 %v281
    %v331 = vunpack.c.h.b16 %v281
    %v332 = vunpack.c.l.b16 %v282
    %v333 = vunpack.c.h.b16 %v282
    %v334 = vunpack.c.l.b16 %v283
    %v335 = vunpack.c.h.b16 %v283
    %v336 = vunpack.c.l.b16 %v284
    %v337 = vunpack.c.h.b16 %v284
    %v338 = vunpack.c.l.b16 %v285
    %v339 = vunpack.c.h.b16 %v285
    %v340 = vunpack.c.l.b16 %v286
    %v341 = vunpack.c.h.b16 %v286
    %v342 = vunpack.c.l.b16 %v287
    %v343 = vunpack.c.h.b16 %v287
    %v344 = vunpack.c.l.b16 %v288
    %v345 = vunpack.c.h.b16 %v288
    %v346 = vunpack.c.l.b16 %v289
    %v347 = vunpack.c.h.b16 %v289
    %v348 = vunpack.c.l.b16 %v290
    %v349 = vunpack.c.h.b16 %v290
    %v350 = vunpack.c.l.b16 %v291
    %v351 = vunpack.c.h.b16 %v291
    %v352 = vpack.c.b16 %v322, %v320
    %v353 = vpack.c.b16 %v323, %v321
    %v354 = vpack.c.b16 %v326, %v324
    %v355 = vpack.c.b16 %v327, %v325
    %v356 = vpack.c.b16 %v330, %v328
    %v357 = vpack.c.b16 %v331, %v329
    %v358 = vpack.c.b16 %v334, %v332
    %v359 = vpack.c.b16 %v335, %v333
    %v360 = vpack.c.b16 %v338, %v336
    %v361 = vpack.c.b16 %v339, %v337
    %v362 = vpack.c.b16 %v342, %v340
    %v363 = vpack.c.b16 %v343, %v341
    %v364 = vpack.c.b16 %v346, %v344
    %v365 = vpack.c.b16 %v347, %v345
    %v366 = vpack.c.b16 %v350, %v348
    %v367 = vpack.c.b16 %v351, %v349
    %384 = vmatprep.subr.bf16.mxu0 %v367
    %385 = vmatpush1.bf16.msra.mxu0 %v366
    %386 = vmatprep.subr.bf16.mxu0 %v365
    %387 = vmatpush1.bf16.msra.mxu0 %v364
    %388 = vmatprep.subr.bf16.mxu0 %v363
    %389 = vmatpush1.bf16.msra.mxu0 %v362
    %390 = vmatprep.subr.bf16.mxu0 %v361
    %391 = vmatpush1.bf16.msra.mxu0 %v360
    %392 = vmatprep.subr.bf16.mxu0 %v359
    %393 = vmatpush1.bf16.msra.mxu0 %v358
    %394 = vmatprep.subr.bf16.mxu0 %v357
    %395 = vmatpush1.bf16.msra.mxu0 %v356
    %396 = vmatprep.subr.bf16.mxu0 %v355
    %397 = vmatpush1.bf16.msra.mxu0 %v354
    %398 = vmatprep.subr.bf16.mxu0 %v353
    %399 = vmatpush1.bf16.msra.mxu0 %v352
    %400 = vmatprep.subr.bf16.mxu0 0
    %401 = vmatpush2.bf16.msra.mxu0 0
    %402 = vmatprep.subr.bf16.mxu0 0
    %403 = vmatpush2.bf16.msra.mxu0 0
    %404 = vmatprep.subr.bf16.mxu0 0
    %405 = vmatpush2.bf16.msra.mxu0 0
    %406 = vmatprep.subr.bf16.mxu0 0
    %407 = vmatpush2.bf16.msra.mxu0 0
    %408 = vmatprep.subr.bf16.mxu0 0
    %409 = vmatpush2.bf16.msra.mxu0 0
    %410 = vmatprep.subr.bf16.mxu0 0
    %411 = vmatpush2.bf16.msra.mxu0 0
    %412 = vmatprep.subr.bf16.mxu0 0
    %413 = vmatpush2.bf16.msra.mxu0 0
    %414 = vmatprep.subr.bf16.mxu0 0
    %415 = vmatpush2.bf16.msra.mxu0 0
    %416 = vmatprep.mubr.bf16.mxu0 0
    %417 = vmatmul.mubr.bf16.gmra.mxu0 %v275
    %v418 = vpop.f32.mrf.mxu0
    %v419 = vadd.f32 %v297, %v418
    %v420 = vpop.f32.mrf.mxu0
    %v421 = vadd.f32 %v301, %v420
    %v422 = vpop.f32.mrf.mxu0
    %v423 = vpop.f32.mrf.mxu0
    %424 = vdwg.mxu0
    %v425 = vld [vmem:[%s7 + $0x3] sm:$0x3]
    %v426 = vld [vmem:[%s7 + $0x5] sm:$0x3]
    %v427 = vrot.slane %v419, 4
    %v428 = vadd.f32 %v419, %v427
    %v429 = vrot.slane %v428, 2
    %v430 = vadd.f32 %v428, %v429
    %v431 = vrot.slane %v430, 1
    %v432 = vadd.f32 %v430, %v431
    %v433 = vrot.slane %v421, 4
    %v434 = vadd.f32 %v421, %v433
    %v435 = vrot.slane %v434, 2
    %v436 = vadd.f32 %v434, %v435
    %v437 = vrot.slane %v436, 1
    %v438 = vadd.f32 %v436, %v437
    %v439 = vrcp.pop 8.0
    %v440 = vmul.f32 %v432, %v439
    %v441 = vmul.f32 %v438, %v439
    %v442 = vsub.f32 %v419, %v440
    %v443 = vsub.f32 %v421, %v441
    %v444 = vmul.f32 %v442, %v442
    %v445 = vmul.f32 %v443, %v443
    %v446 = vrot.slane %v444, 4
    %v447 = vadd.f32 %v444, %v446
    %v448 = vrot.slane %v447, 2
    %v449 = vadd.f32 %v447, %v448
    %v450 = vrot.slane %v449, 1
    %v451 = vadd.f32 %v449, %v450
    %v452 = vrot.slane %v445, 4
    %v453 = vadd.f32 %v445, %v452
    %v454 = vrot.slane %v453, 2
    %v455 = vadd.f32 %v453, %v454
    %v456 = vrot.slane %v455, 1
    %v457 = vadd.f32 %v455, %v456
    %v458 = vmul.f32 %v451, %v439
    %v459 = vmul.f32 %v457, %v439
    %v460 = vadd.f32 %v458, 1e-05
    %v461 = vadd.f32 %v459, 1e-05
    %v462 = vrsqrt.pop %v460
    %v463 = vrsqrt.pop %v461
    %v464 = vmul.f32 %v442, %v462
    %v465 = vmul.f32 %v443, %v463
    %v467 = vlaneseq
    %v468 = vshrl.u32 %v467, 7
    %v469 = vsub.s32 0, %v468
    %v470 = vrot.slane %v425, %v469
    %v471 = vlaneseq
    %v472 = vshrl.u32 %v471, 7
    %v473 = vsub.s32 1, %v472
    %v474 = vrot.slane %v425, %v473
    %v477 = vmul.f32 %v464, %v470
    %v478 = vmul.f32 %v465, %v474
    %v480 = vlaneseq
    %v481 = vshrl.u32 %v480, 7
    %v482 = vsub.s32 0, %v481
    %v483 = vrot.slane %v426, %v482
    %v484 = vlaneseq
    %v485 = vshrl.u32 %v484, 7
    %v486 = vsub.s32 1, %v485
    %v487 = vrot.slane %v426, %v486
    %v490 = vadd.f32 %v477, %v483
    %v491 = vadd.f32 %v478, %v487
    %vm492 = vcmp.ge.f32.partialorder %v490, 0.0
    %vm493 = vcmp.ge.f32.partialorder %v491, 0.0
    %v494 = vmul.f32 %v490, 0.2
    %v495 = vmul.f32 %v491, 0.2
    %v496 = vsel %vm492, %v490, %v494
    %v497 = vsel %vm493, %v491, %v495
    %v498 = vpack.c.bf16 %v496, %v496
    %v499 = vpack.c.bf16 %v497, %v497
    %v500 = vld [vmem:[#allocation7] sm:$0xff]
    %v501 = vld [vmem:[#allocation7 + $0x8] sm:$0xff]
    %v502 = vld [vmem:[#allocation7 + $0x10] sm:$0xff]
    %v503 = vld [vmem:[#allocation7 + $0x18] sm:$0xff]
    %v504 = vld [vmem:[#allocation7 + $0x20] sm:$0xff]
    %v505 = vld [vmem:[#allocation7 + $0x28] sm:$0xff]
    %v506 = vld [vmem:[#allocation7 + $0x30] sm:$0xff]
    %v507 = vld [vmem:[#allocation7 + $0x38] sm:$0xff]
    %v508 = vld [vmem:[#allocation7 + $0x40] sm:$0xff]
    %v509 = vld [vmem:[#allocation7 + $0x48] sm:$0xff]
    %v510 = vld [vmem:[#allocation7 + $0x50] sm:$0xff]
    %v511 = vld [vmem:[#allocation7 + $0x58] sm:$0xff]
    %v512 = vld [vmem:[#allocation7 + $0x60] sm:$0xff]
    %v513 = vld [vmem:[#allocation7 + $0x68] sm:$0xff]
    %v514 = vld [vmem:[#allocation7 + $0x70] sm:$0xff]
    %v515 = vld [vmem:[#allocation7 + $0x78] sm:$0xff]
    %v516 = vld [vmem:[#allocation7 + $0x80] sm:$0xff]
    %v517 = vld [vmem:[#allocation7 + $0x88] sm:$0xff]
    %v518 = vld [vmem:[#allocation7 + $0x90] sm:$0xff]
    %v519 = vld [vmem:[#allocation7 + $0x98] sm:$0xff]
    %v520 = vld [vmem:[#allocation7 + $0xa0] sm:$0xff]
    %v521 = vld [vmem:[#allocation7 + $0xa8] sm:$0xff]
    %v522 = vld [vmem:[#allocation7 + $0xb0] sm:$0xff]
    %v523 = vld [vmem:[#allocation7 + $0xb8] sm:$0xff]
    %v524 = vld [vmem:[#allocation7 + $0xc0] sm:$0xff]
    %v525 = vld [vmem:[#allocation7 + $0xc8] sm:$0xff]
    %v526 = vld [vmem:[#allocation7 + $0xd0] sm:$0xff]
    %v527 = vld [vmem:[#allocation7 + $0xd8] sm:$0xff]
    %v528 = vld [vmem:[#allocation7 + $0xe0] sm:$0xff]
    %v529 = vld [vmem:[#allocation7 + $0xe8] sm:$0xff]
    %v530 = vld [vmem:[#allocation7 + $0xf0] sm:$0xff]
    %v531 = vld [vmem:[#allocation7 + $0xf8] sm:$0xff]
    %v532 = vld [vmem:[#allocation7 + $0x100] sm:$0xff]
    %v533 = vld [vmem:[#allocation7 + $0x108] sm:$0xff]
    %v534 = vld [vmem:[#allocation7 + $0x110] sm:$0xff]
    %v535 = vld [vmem:[#allocation7 + $0x118] sm:$0xff]
    %v536 = vld [vmem:[#allocation7 + $0x120] sm:$0xff]
    %v537 = vld [vmem:[#allocation7 + $0x128] sm:$0xff]
    %v538 = vld [vmem:[#allocation7 + $0x130] sm:$0xff]
    %v539 = vld [vmem:[#allocation7 + $0x138] sm:$0xff]
    %v540 = vld [vmem:[#allocation7 + $0x140] sm:$0xff]
    %v541 = vld [vmem:[#allocation7 + $0x148] sm:$0xff]
    %v542 = vld [vmem:[#allocation7 + $0x150] sm:$0xff]
    %v543 = vld [vmem:[#allocation7 + $0x158] sm:$0xff]
    %v544 = vld [vmem:[#allocation7 + $0x160] sm:$0xff]
    %v545 = vld [vmem:[#allocation7 + $0x168] sm:$0xff]
    %v546 = vld [vmem:[#allocation7 + $0x170] sm:$0xff]
    %v547 = vld [vmem:[#allocation7 + $0x178] sm:$0xff]
    %v548 = vld [vmem:[#allocation7 + $0x180] sm:$0xff]
    %v549 = vld [vmem:[#allocation7 + $0x188] sm:$0xff]
    %v550 = vld [vmem:[#allocation7 + $0x190] sm:$0xff]
    %v551 = vld [vmem:[#allocation7 + $0x198] sm:$0xff]
    %v552 = vld [vmem:[#allocation7 + $0x1a0] sm:$0xff]
    %v553 = vld [vmem:[#allocation7 + $0x1a8] sm:$0xff]
    %v554 = vld [vmem:[#allocation7 + $0x1b0] sm:$0xff]
    %v555 = vld [vmem:[#allocation7 + $0x1b8] sm:$0xff]
    %v556 = vld [vmem:[#allocation7 + $0x1c0] sm:$0xff]
    %v557 = vld [vmem:[#allocation7 + $0x1c8] sm:$0xff]
    %v558 = vld [vmem:[#allocation7 + $0x1d0] sm:$0xff]
    %v559 = vld [vmem:[#allocation7 + $0x1d8] sm:$0xff]
    %v560 = vld [vmem:[#allocation7 + $0x1e0] sm:$0xff]
    %v561 = vld [vmem:[#allocation7 + $0x1e8] sm:$0xff]
    %v562 = vld [vmem:[#allocation7 + $0x1f0] sm:$0xff]
    %v563 = vld [vmem:[#allocation7 + $0x1f8] sm:$0xff]
    %v564 = vld [vmem:[%s7 + $0x7] sm:$0xf]
    %v566 = vlaneseq
    %v567 = vshrl.u32 %v566, 7
    %v568 = vsub.s32 0, %v567
    %v569 = vrot.slane %v564, %v568
    %v570 = vlaneseq
    %v571 = vshrl.u32 %v570, 7
    %v572 = vsub.s32 1, %v571
    %v573 = vrot.slane %v564, %v572
    %v574 = vlaneseq
    %v575 = vshrl.u32 %v574, 7
    %v576 = vsub.s32 2, %v575
    %v577 = vrot.slane %v564, %v576
    %v578 = vlaneseq
    %v579 = vshrl.u32 %v578, 7
    %v580 = vsub.s32 3, %v579
    %v581 = vrot.slane %v564, %v580
    %v650 = vunpack.c.l.b16 %v500
    %v651 = vunpack.c.h.b16 %v500
    %v652 = vunpack.c.l.b16 %v501
    %v653 = vunpack.c.h.b16 %v501
    %v654 = vunpack.c.l.b16 %v502
    %v655 = vunpack.c.h.b16 %v502
    %v656 = vunpack.c.l.b16 %v503
    %v657 = vunpack.c.h.b16 %v503
    %v658 = vunpack.c.l.b16 %v504
    %v659 = vunpack.c.h.b16 %v504
    %v660 = vunpack.c.l.b16 %v505
    %v661 = vunpack.c.h.b16 %v505
    %v662 = vunpack.c.l.b16 %v506
    %v663 = vunpack.c.h.b16 %v506
    %v664 = vunpack.c.l.b16 %v507
    %v665 = vunpack.c.h.b16 %v507
    %v666 = vunpack.c.l.b16 %v508
    %v667 = vunpack.c.h.b16 %v508
    %v668 = vunpack.c.l.b16 %v509
    %v669 = vunpack.c.h.b16 %v509
    %v670 = vunpack.c.l.b16 %v510
    %v671 = vunpack.c.h.b16 %v510
    %v672 = vunpack.c.l.b16 %v511
    %v673 = vunpack.c.h.b16 %v511
    %v674 = vunpack.c.l.b16 %v512
    %v675 = vunpack.c.h.b16 %v512
    %v676 = vunpack.c.l.b16 %v513
    %v677 = vunpack.c.h.b16 %v513
    %v678 = vunpack.c.l.b16 %v514
    %v679 = vunpack.c.h.b16 %v514
    %v680 = vunpack.c.l.b16 %v515
    %v681 = vunpack.c.h.b16 %v515
    %v682 = vunpack.c.l.b16 %v516
    %v683 = vunpack.c.h.b16 %v516
    %v684 = vunpack.c.l.b16 %v517
    %v685 = vunpack.c.h.b16 %v517
    %v686 = vunpack.c.l.b16 %v518
    %v687 = vunpack.c.h.b16 %v518
    %v688 = vunpack.c.l.b16 %v519
    %v689 = vunpack.c.h.b16 %v519
    %v690 = vunpack.c.l.b16 %v520
    %v691 = vunpack.c.h.b16 %v520
    %v692 = vunpack.c.l.b16 %v521
    %v693 = vunpack.c.h.b16 %v521
    %v694 = vunpack.c.l.b16 %v522
    %v695 = vunpack.c.h.b16 %v522
    %v696 = vunpack.c.l.b16 %v523
    %v697 = vunpack.c.h.b16 %v523
    %v698 = vunpack.c.l.b16 %v524
    %v699 = vunpack.c.h.b16 %v524
    %v700 = vunpack.c.l.b16 %v525
    %v701 = vunpack.c.h.b16 %v525
    %v702 = vunpack.c.l.b16 %v526
    %v703 = vunpack.c.h.b16 %v526
    %v704 = vunpack.c.l.b16 %v527
    %v705 = vunpack.c.h.b16 %v527
    %v706 = vunpack.c.l.b16 %v528
    %v707 = vunpack.c.h.b16 %v528
    %v708 = vunpack.c.l.b16 %v529
    %v709 = vunpack.c.h.b16 %v529
    %v710 = vunpack.c.l.b16 %v530
    %v711 = vunpack.c.h.b16 %v530
    %v712 = vunpack.c.l.b16 %v531
    %v713 = vunpack.c.h.b16 %v531
    %v714 = vunpack.c.l.b16 %v532
    %v715 = vunpack.c.h.b16 %v532
    %v716 = vunpack.c.l.b16 %v533
    %v717 = vunpack.c.h.b16 %v533
    %v718 = vunpack.c.l.b16 %v534
    %v719 = vunpack.c.h.b16 %v534
    %v720 = vunpack.c.l.b16 %v535
    %v721 = vunpack.c.h.b16 %v535
    %v722 = vunpack.c.l.b16 %v536
    %v723 = vunpack.c.h.b16 %v536
    %v724 = vunpack.c.l.b16 %v537
    %v725 = vunpack.c.h.b16 %v537
    %v726 = vunpack.c.l.b16 %v538
    %v727 = vunpack.c.h.b16 %v538
    %v728 = vunpack.c.l.b16 %v539
    %v729 = vunpack.c.h.b16 %v539
    %v730 = vunpack.c.l.b16 %v540
    %v731 = vunpack.c.h.b16 %v540
    %v732 = vunpack.c.l.b16 %v541
    %v733 = vunpack.c.h.b16 %v541
    %v734 = vunpack.c.l.b16 %v542
    %v735 = vunpack.c.h.b16 %v542
    %v736 = vunpack.c.l.b16 %v543
    %v737 = vunpack.c.h.b16 %v543
    %v738 = vunpack.c.l.b16 %v544
    %v739 = vunpack.c.h.b16 %v544
    %v740 = vunpack.c.l.b16 %v545
    %v741 = vunpack.c.h.b16 %v545
    %v742 = vunpack.c.l.b16 %v546
    %v743 = vunpack.c.h.b16 %v546
    %v744 = vunpack.c.l.b16 %v547
    %v745 = vunpack.c.h.b16 %v547
    %v746 = vunpack.c.l.b16 %v548
    %v747 = vunpack.c.h.b16 %v548
    %v748 = vunpack.c.l.b16 %v549
    %v749 = vunpack.c.h.b16 %v549
    %v750 = vunpack.c.l.b16 %v550
    %v751 = vunpack.c.h.b16 %v550
    %v752 = vunpack.c.l.b16 %v551
    %v753 = vunpack.c.h.b16 %v551
    %v754 = vunpack.c.l.b16 %v552
    %v755 = vunpack.c.h.b16 %v552
    %v756 = vunpack.c.l.b16 %v553
    %v757 = vunpack.c.h.b16 %v553
    %v758 = vunpack.c.l.b16 %v554
    %v759 = vunpack.c.h.b16 %v554
    %v760 = vunpack.c.l.b16 %v555
    %v761 = vunpack.c.h.b16 %v555
    %v762 = vunpack.c.l.b16 %v556
    %v763 = vunpack.c.h.b16 %v556
    %v764 = vunpack.c.l.b16 %v557
    %v765 = vunpack.c.h.b16 %v557
    %v766 = vunpack.c.l.b16 %v558
    %v767 = vunpack.c.h.b16 %v558
    %v768 = vunpack.c.l.b16 %v559
    %v769 = vunpack.c.h.b16 %v559
    %v770 = vunpack.c.l.b16 %v560
    %v771 = vunpack.c.h.b16 %v560
    %v772 = vunpack.c.l.b16 %v561
    %v773 = vunpack.c.h.b16 %v561
    %v774 = vunpack.c.l.b16 %v562
    %v775 = vunpack.c.h.b16 %v562
    %v776 = vunpack.c.l.b16 %v563
    %v777 = vunpack.c.h.b16 %v563
    %v778 = vpack.c.b16 %v654, %v650
    %v779 = vpack.c.b16 %v655, %v651
    %v780 = vpack.c.b16 %v656, %v652
    %v781 = vpack.c.b16 %v657, %v653
    %v782 = vpack.c.b16 %v662, %v658
    %v783 = vpack.c.b16 %v663, %v659
    %v784 = vpack.c.b16 %v664, %v660
    %v785 = vpack.c.b16 %v665, %v661
    %v786 = vpack.c.b16 %v670, %v666
    %v787 = vpack.c.b16 %v671, %v667
    %v788 = vpack.c.b16 %v672, %v668
    %v789 = vpack.c.b16 %v673, %v669
    %v790 = vpack.c.b16 %v678, %v674
    %v791 = vpack.c.b16 %v679, %v675
    %v792 = vpack.c.b16 %v680, %v676
    %v793 = vpack.c.b16 %v681, %v677
    %v794 = vpack.c.b16 %v686, %v682
    %v795 = vpack.c.b16 %v687, %v683
    %v796 = vpack.c.b16 %v688, %v684
    %v797 = vpack.c.b16 %v689, %v685
    %v798 = vpack.c.b16 %v694, %v690
    %v799 = vpack.c.b16 %v695, %v691
    %v800 = vpack.c.b16 %v696, %v692
    %v801 = vpack.c.b16 %v697, %v693
    %v802 = vpack.c.b16 %v702, %v698
    %v803 = vpack.c.b16 %v703, %v699
    %v804 = vpack.c.b16 %v704, %v700
    %v805 = vpack.c.b16 %v705, %v701
    %v806 = vpack.c.b16 %v710, %v706
    %v807 = vpack.c.b16 %v711, %v707
    %v808 = vpack.c.b16 %v712, %v708
    %v809 = vpack.c.b16 %v713, %v709
    %v810 = vpack.c.b16 %v718, %v714
    %v811 = vpack.c.b16 %v719, %v715
    %v812 = vpack.c.b16 %v720, %v716
    %v813 = vpack.c.b16 %v721, %v717
    %v814 = vpack.c.b16 %v726, %v722
    %v815 = vpack.c.b16 %v727, %v723
    %v816 = vpack.c.b16 %v728, %v724
    %v817 = vpack.c.b16 %v729, %v725
    %v818 = vpack.c.b16 %v734, %v730
    %v819 = vpack.c.b16 %v735, %v731
    %v820 = vpack.c.b16 %v736, %v732
    %v821 = vpack.c.b16 %v737, %v733
    %v822 = vpack.c.b16 %v742, %v738
    %v823 = vpack.c.b16 %v743, %v739
    %v824 = vpack.c.b16 %v744, %v740
    %v825 = vpack.c.b16 %v745, %v741
    %v826 = vpack.c.b16 %v750, %v746
    %v827 = vpack.c.b16 %v751, %v747
    %v828 = vpack.c.b16 %v752, %v748
    %v829 = vpack.c.b16 %v753, %v749
    %v830 = vpack.c.b16 %v758, %v754
    %v831 = vpack.c.b16 %v759, %v755
    %v832 = vpack.c.b16 %v760, %v756
    %v833 = vpack.c.b16 %v761, %v757
    %v834 = vpack.c.b16 %v766, %v762
    %v835 = vpack.c.b16 %v767, %v763
    %v836 = vpack.c.b16 %v768, %v764
    %v837 = vpack.c.b16 %v769, %v765
    %v838 = vpack.c.b16 %v774, %v770
    %v839 = vpack.c.b16 %v775, %v771
    %v840 = vpack.c.b16 %v776, %v772
    %v841 = vpack.c.b16 %v777, %v773
    %906 = vmatprep.subr.bf16.mxu0 %v807
    %907 = vmatpush1.bf16.msra.mxu0 %v806
    %908 = vmatprep.subr.bf16.mxu0 %v803
    %909 = vmatpush1.bf16.msra.mxu0 %v802
    %910 = vmatprep.subr.bf16.mxu0 %v799
    %911 = vmatpush1.bf16.msra.mxu0 %v798
    %912 = vmatprep.subr.bf16.mxu0 %v795
    %913 = vmatpush1.bf16.msra.mxu0 %v794
    %914 = vmatprep.subr.bf16.mxu0 %v791
    %915 = vmatpush1.bf16.msra.mxu0 %v790
    %916 = vmatprep.subr.bf16.mxu0 %v787
    %917 = vmatpush1.bf16.msra.mxu0 %v786
    %918 = vmatprep.subr.bf16.mxu0 %v783
    %919 = vmatpush1.bf16.msra.mxu0 %v782
    %920 = vmatprep.subr.bf16.mxu0 %v779
    %921 = vmatpush1.bf16.msra.mxu0 %v778
    %922 = vmatprep.subr.bf16.mxu0 %v839
    %923 = vmatpush2.bf16.msra.mxu0 %v838
    %924 = vmatprep.subr.bf16.mxu0 %v835
    %925 = vmatpush2.bf16.msra.mxu0 %v834
    %926 = vmatprep.subr.bf16.mxu0 %v831
    %927 = vmatpush2.bf16.msra.mxu0 %v830
    %928 = vmatprep.subr.bf16.mxu0 %v827
    %929 = vmatpush2.bf16.msra.mxu0 %v826
    %930 = vmatprep.subr.bf16.mxu0 %v823
    %931 = vmatpush2.bf16.msra.mxu0 %v822
    %932 = vmatprep.subr.bf16.mxu0 %v819
    %933 = vmatpush2.bf16.msra.mxu0 %v818
    %934 = vmatprep.subr.bf16.mxu0 %v815
    %935 = vmatpush2.bf16.msra.mxu0 %v814
    %936 = vmatprep.subr.bf16.mxu0 %v811
    %937 = vmatpush2.bf16.msra.mxu0 %v810
    %938 = vmatprep.mubr.bf16.mxu0 %v499
    %939 = vmatmul.mubr.bf16.gmra.mxu0 %v498
    %v940 = vpop.f32.mrf.mxu0
    %v941 = vadd.f32 %v569, %v940
    %v942 = vpop.f32.mrf.mxu0
    %v943 = vadd.f32 %v573, %v942
    %v944 = vpop.f32.mrf.mxu0
    %v945 = vpop.f32.mrf.mxu0
    %946 = vdwg.mxu0
    %947 = vmatprep.subr.bf16.mxu0 %v809
    %948 = vmatpush1.bf16.msra.mxu0 %v808
    %949 = vmatprep.subr.bf16.mxu0 %v805
    %950 = vmatpush1.bf16.msra.mxu0 %v804
    %951 = vmatprep.subr.bf16.mxu0 %v801
    %952 = vmatpush1.bf16.msra.mxu0 %v800
    %953 = vmatprep.subr.bf16.mxu0 %v797
    %954 = vmatpush1.bf16.msra.mxu0 %v796
    %955 = vmatprep.subr.bf16.mxu0 %v793
    %956 = vmatpush1.bf16.msra.mxu0 %v792
    %957 = vmatprep.subr.bf16.mxu0 %v789
    %958 = vmatpush1.bf16.msra.mxu0 %v788
    %959 = vmatprep.subr.bf16.mxu0 %v785
    %960 = vmatpush1.bf16.msra.mxu0 %v784
    %961 = vmatprep.subr.bf16.mxu0 %v781
    %962 = vmatpush1.bf16.msra.mxu0 %v780
    %963 = vmatprep.subr.bf16.mxu0 %v841
    %964 = vmatpush2.bf16.msra.mxu0 %v840
    %965 = vmatprep.subr.bf16.mxu0 %v837
    %966 = vmatpush2.bf16.msra.mxu0 %v836
    %967 = vmatprep.subr.bf16.mxu0 %v833
    %968 = vmatpush2.bf16.msra.mxu0 %v832
    %969 = vmatprep.subr.bf16.mxu0 %v829
    %970 = vmatpush2.bf16.msra.mxu0 %v828
    %971 = vmatprep.subr.bf16.mxu0 %v825
    %972 = vmatpush2.bf16.msra.mxu0 %v824
    %973 = vmatprep.subr.bf16.mxu0 %v821
    %974 = vmatpush2.bf16.msra.mxu0 %v820
    %975 = vmatprep.subr.bf16.mxu0 %v817
    %976 = vmatpush2.bf16.msra.mxu0 %v816
    %977 = vmatprep.subr.bf16.mxu0 %v813
    %978 = vmatpush2.bf16.msra.mxu0 %v812
    %979 = vmatprep.mubr.bf16.mxu0 %v499
    %980 = vmatmul.mubr.bf16.gmra.mxu0 %v498
    %v981 = vpop.f32.mrf.mxu0
    %v982 = vadd.f32 %v577, %v981
    %v983 = vpop.f32.mrf.mxu0
    %v984 = vadd.f32 %v581, %v983
    %v985 = vpop.f32.mrf.mxu0
    %v986 = vpop.f32.mrf.mxu0
    %987 = vdwg.mxu0
    %v988 = vld [vmem:[%s7 + $0xb] sm:$0xf]
    %v989 = vld [vmem:[%s7 + $0xf] sm:$0xf]
    %v990 = vrot.slane %v941, 4
    %v991 = vadd.f32 %v941, %v990
    %v992 = vrot.slane %v991, 2
    %v993 = vadd.f32 %v991, %v992
    %v994 = vrot.slane %v993, 1
    %v995 = vadd.f32 %v993, %v994
    %v996 = vrot.slane %v943, 4
    %v997 = vadd.f32 %v943, %v996
    %v998 = vrot.slane %v997, 2
    %v999 = vadd.f32 %v997, %v998
    %v1000 = vrot.slane %v999, 1
    %v1001 = vadd.f32 %v999, %v1000
    %v1002 = vrot.slane %v982, 4
    %v1003 = vadd.f32 %v982, %v1002
    %v1004 = vrot.slane %v1003, 2
    %v1005 = vadd.f32 %v1003, %v1004
    %v1006 = vrot.slane %v1005, 1
    %v1007 = vadd.f32 %v1005, %v1006
    %v1008 = vrot.slane %v984, 4
    %v1009 = vadd.f32 %v984, %v1008
    %v1010 = vrot.slane %v1009, 2
    %v1011 = vadd.f32 %v1009, %v1010
    %v1012 = vrot.slane %v1011, 1
    %v1013 = vadd.f32 %v1011, %v1012
    %v1014 = vmul.f32 %v995, %v439
    %v1015 = vmul.f32 %v1001, %v439
    %v1016 = vmul.f32 %v1007, %v439
    %v1017 = vmul.f32 %v1013, %v439
    %v1018 = vsub.f32 %v941, %v1014
    %v1019 = vsub.f32 %v943, %v1015
    %v1020 = vsub.f32 %v982, %v1016
    %v1021 = vsub.f32 %v984, %v1017
    %v1022 = vmul.f32 %v1018, %v1018
    %v1023 = vmul.f32 %v1019, %v1019
    %v1024 = vmul.f32 %v1020, %v1020
    %v1025 = vmul.f32 %v1021, %v1021
    %v1026 = vrot.slane %v1022, 4
    %v1027 = vadd.f32 %v1022, %v1026
    %v1028 = vrot.slane %v1027, 2
    %v1029 = vadd.f32 %v1027, %v1028
    %v1030 = vrot.slane %v1029, 1
    %v1031 = vadd.f32 %v1029, %v1030
    %v1032 = vrot.slane %v1023, 4
    %v1033 = vadd.f32 %v1023, %v1032
    %v1034 = vrot.slane %v1033, 2
    %v1035 = vadd.f32 %v1033, %v1034
    %v1036 = vrot.slane %v1035, 1
    %v1037 = vadd.f32 %v1035, %v1036
    %v1038 = vrot.slane %v1024, 4
    %v1039 = vadd.f32 %v1024, %v1038
    %v1040 = vrot.slane %v1039, 2
    %v1041 = vadd.f32 %v1039, %v1040
    %v1042 = vrot.slane %v1041, 1
    %v1043 = vadd.f32 %v1041, %v1042
    %v1044 = vrot.slane %v1025, 4
    %v1045 = vadd.f32 %v1025, %v1044
    %v1046 = vrot.slane %v1045, 2
    %v1047 = vadd.f32 %v1045, %v1046
    %v1048 = vrot.slane %v1047, 1
    %v1049 = vadd.f32 %v1047, %v1048
    %v1050 = vmul.f32 %v1031, %v439
    %v1051 = vmul.f32 %v1037, %v439
    %v1052 = vmul.f32 %v1043, %v439
    %v1053 = vmul.f32 %v1049, %v439
    %v1054 = vadd.f32 %v1050, 1e-05
    %v1055 = vadd.f32 %v1051, 1e-05
    %v1056 = vadd.f32 %v1052, 1e-05
    %v1057 = vadd.f32 %v1053, 1e-05
    %v1058 = vrsqrt.pop %v1054
    %v1059 = vrsqrt.pop %v1055
    %v1060 = vrsqrt.pop %v1056
    %v1061 = vrsqrt.pop %v1057
    %v1062 = vmul.f32 %v1018, %v1058
    %v1063 = vmul.f32 %v1019, %v1059
    %v1064 = vmul.f32 %v1020, %v1060
    %v1065 = vmul.f32 %v1021, %v1061
    %v1067 = vlaneseq
    %v1068 = vshrl.u32 %v1067, 7
    %v1069 = vsub.s32 0, %v1068
    %v1070 = vrot.slane %v988, %v1069
    %v1071 = vlaneseq
    %v1072 = vshrl.u32 %v1071, 7
    %v1073 = vsub.s32 1, %v1072
    %v1074 = vrot.slane %v988, %v1073
    %v1075 = vlaneseq
    %v1076 = vshrl.u32 %v1075, 7
    %v1077 = vsub.s32 2, %v1076
    %v1078 = vrot.slane %v988, %v1077
    %v1079 = vlaneseq
    %v1080 = vshrl.u32 %v1079, 7
    %v1081 = vsub.s32 3, %v1080
    %v1082 = vrot.slane %v988, %v1081
    %v1087 = vmul.f32 %v1062, %v1070
    %v1088 = vmul.f32 %v1063, %v1074
    %v1089 = vmul.f32 %v1064, %v1078
    %v1090 = vmul.f32 %v1065, %v1082
    %v1092 = vlaneseq
    %v1093 = vshrl.u32 %v1092, 7
    %v1094 = vsub.s32 0, %v1093
    %v1095 = vrot.slane %v989, %v1094
    %v1096 = vlaneseq
    %v1097 = vshrl.u32 %v1096, 7
    %v1098 = vsub.s32 1, %v1097
    %v1099 = vrot.slane %v989, %v1098
    %v1100 = vlaneseq
    %v1101 = vshrl.u32 %v1100, 7
    %v1102 = vsub.s32 2, %v1101
    %v1103 = vrot.slane %v989, %v1102
    %v1104 = vlaneseq
    %v1105 = vshrl.u32 %v1104, 7
    %v1106 = vsub.s32 3, %v1105
    %v1107 = vrot.slane %v989, %v1106
    %v1112 = vadd.f32 %v1087, %v1095
    %v1113 = vadd.f32 %v1088, %v1099
    %v1114 = vadd.f32 %v1089, %v1103
    %v1115 = vadd.f32 %v1090, %v1107
    %vm1116 = vcmp.ge.f32.partialorder %v1112, 0.0
    %vm1117 = vcmp.ge.f32.partialorder %v1113, 0.0
    %vm1118 = vcmp.ge.f32.partialorder %v1114, 0.0
    %vm1119 = vcmp.ge.f32.partialorder %v1115, 0.0
    %v1120 = vmul.f32 %v1112, 0.2
    %v1121 = vmul.f32 %v1113, 0.2
    %v1122 = vmul.f32 %v1114, 0.2
    %v1123 = vmul.f32 %v1115, 0.2
    %v1124 = vsel %vm1116, %v1112, %v1120
    %v1125 = vsel %vm1117, %v1113, %v1121
    %v1126 = vsel %vm1118, %v1114, %v1122
    %v1127 = vsel %vm1119, %v1115, %v1123
    %v1128 = vpack.c.bf16 %v1124, %v1124
    %v1129 = vpack.c.bf16 %v1125, %v1125
    %v1130 = vpack.c.bf16 %v1126, %v1126
    %v1131 = vpack.c.bf16 %v1127, %v1127
    %v1132 = vld [vmem:[#allocation9] sm:$0xff]
    %v1133 = vld [vmem:[#allocation9 + $0x8] sm:$0xff]
    %v1134 = vld [vmem:[#allocation9 + $0x10] sm:$0xff]
    %v1135 = vld [vmem:[#allocation9 + $0x18] sm:$0xf]
    %v1136 = vld [vmem:[#allocation9 + $0x1c] sm:$0xff]
    %v1137 = vld [vmem:[#allocation9 + $0x24] sm:$0xff]
    %v1138 = vld [vmem:[#allocation9 + $0x2c] sm:$0xff]
    %v1139 = vld [vmem:[#allocation9 + $0x34] sm:$0xf]
    %v1140 = vld [vmem:[#allocation9 + $0x38] sm:$0xff]
    %v1141 = vld [vmem:[#allocation9 + $0x40] sm:$0xff]
    %v1142 = vld [vmem:[#allocation9 + $0x48] sm:$0xff]
    %v1143 = vld [vmem:[#allocation9 + $0x50] sm:$0xf]
    %v1144 = vld [vmem:[#allocation9 + $0x54] sm:$0xff]
    %v1145 = vld [vmem:[#allocation9 + $0x5c] sm:$0xff]
    %v1146 = vld [vmem:[#allocation9 + $0x64] sm:$0xff]
    %v1147 = vld [vmem:[#allocation9 + $0x6c] sm:$0xf]
    %v1148 = vld [vmem:[#allocation9 + $0x70] sm:$0xff]
    %v1149 = vld [vmem:[#allocation9 + $0x78] sm:$0xff]
    %v1150 = vld [vmem:[#allocation9 + $0x80] sm:$0xff]
    %v1151 = vld [vmem:[#allocation9 + $0x88] sm:$0xf]
    %v1152 = vld [vmem:[#allocation9 + $0x8c] sm:$0xff]
    %v1153 = vld [vmem:[#allocation9 + $0x94] sm:$0xff]
    %v1154 = vld [vmem:[#allocation9 + $0x9c] sm:$0xff]
    %v1155 = vld [vmem:[#allocation9 + $0xa4] sm:$0xf]
    %v1156 = vld [vmem:[#allocation9 + $0xa8] sm:$0xff]
    %v1157 = vld [vmem:[#allocation9 + $0xb0] sm:$0xff]
    %v1158 = vld [vmem:[#allocation9 + $0xb8] sm:$0xff]
    %v1159 = vld [vmem:[#allocation9 + $0xc0] sm:$0xf]
    %v1160 = vld [vmem:[#allocation9 + $0xc4] sm:$0xff]
    %v1161 = vld [vmem:[#allocation9 + $0xcc] sm:$0xff]
    %v1162 = vld [vmem:[#allocation9 + $0xd4] sm:$0xff]
    %v1163 = vld [vmem:[#allocation9 + $0xdc] sm:$0xf]
    %v1164 = vld [vmem:[#allocation9 + $0xe0] sm:$0xff]
    %v1165 = vld [vmem:[#allocation9 + $0xe8] sm:$0xff]
    %v1166 = vld [vmem:[#allocation9 + $0xf0] sm:$0xff]
    %v1167 = vld [vmem:[#allocation9 + $0xf8] sm:$0xf]
    %v1168 = vld [vmem:[#allocation9 + $0xfc] sm:$0xff]
    %v1169 = vld [vmem:[#allocation9 + $0x104] sm:$0xff]
    %v1170 = vld [vmem:[#allocation9 + $0x10c] sm:$0xff]
    %v1171 = vld [vmem:[#allocation9 + $0x114] sm:$0xf]
    %v1172 = vld [vmem:[#allocation9 + $0x118] sm:$0xff]
    %v1173 = vld [vmem:[#allocation9 + $0x120] sm:$0xff]
    %v1174 = vld [vmem:[#allocation9 + $0x128] sm:$0xff]
    %v1175 = vld [vmem:[#allocation9 + $0x130] sm:$0xf]
    %v1176 = vld [vmem:[#allocation9 + $0x134] sm:$0xff]
    %v1177 = vld [vmem:[#allocation9 + $0x13c] sm:$0xff]
    %v1178 = vld [vmem:[#allocation9 + $0x144] sm:$0xff]
    %v1179 = vld [vmem:[#allocation9 + $0x14c] sm:$0xf]
    %v1180 = vld [vmem:[#allocation9 + $0x150] sm:$0xff]
    %v1181 = vld [vmem:[#allocation9 + $0x158] sm:$0xff]
    %v1182 = vld [vmem:[#allocation9 + $0x160] sm:$0xff]
    %v1183 = vld [vmem:[#allocation9 + $0x168] sm:$0xf]
    %v1184 = vld [vmem:[#allocation9 + $0x16c] sm:$0xff]
    %v1185 = vld [vmem:[#allocation9 + $0x174] sm:$0xff]
    %v1186 = vld [vmem:[#allocation9 + $0x17c] sm:$0xff]
    %v1187 = vld [vmem:[#allocation9 + $0x184] sm:$0xf]
    %v1188 = vld [vmem:[#allocation9 + $0x188] sm:$0xff]
    %v1189 = vld [vmem:[#allocation9 + $0x190] sm:$0xff]
    %v1190 = vld [vmem:[#allocation9 + $0x198] sm:$0xff]
    %v1191 = vld [vmem:[#allocation9 + $0x1a0] sm:$0xf]
    %v1192 = vld [vmem:[#allocation9 + $0x1a4] sm:$0xff]
    %v1193 = vld [vmem:[#allocation9 + $0x1ac] sm:$0xff]
    %v1194 = vld [vmem:[#allocation9 + $0x1b4] sm:$0xff]
    %v1195 = vld [vmem:[#allocation9 + $0x1bc] sm:$0xf]
    %v1196 = vld [vmem:[#allocation9 + $0x1c0] sm:$0xff]
    %v1197 = vld [vmem:[#allocation9 + $0x1c8] sm:$0xff]
    %v1198 = vld [vmem:[#allocation9 + $0x1d0] sm:$0xff]
    %v1199 = vld [vmem:[#allocation9 + $0x1d8] sm:$0xf]
    %v1200 = vld [vmem:[#allocation9 + $0x1dc] sm:$0xff]
    %v1201 = vld [vmem:[#allocation9 + $0x1e4] sm:$0xff]
    %v1202 = vld [vmem:[#allocation9 + $0x1ec] sm:$0xff]
    %v1203 = vld [vmem:[#allocation9 + $0x1f4] sm:$0xf]
    %v1204 = vld [vmem:[#allocation9 + $0x1f8] sm:$0xff]
    %v1205 = vld [vmem:[#allocation9 + $0x200] sm:$0xff]
    %v1206 = vld [vmem:[#allocation9 + $0x208] sm:$0xff]
    %v1207 = vld [vmem:[#allocation9 + $0x210] sm:$0xf]
    %v1208 = vld [vmem:[#allocation9 + $0x214] sm:$0xff]
    %v1209 = vld [vmem:[#allocation9 + $0x21c] sm:$0xff]
    %v1210 = vld [vmem:[#allocation9 + $0x224] sm:$0xff]
    %v1211 = vld [vmem:[#allocation9 + $0x22c] sm:$0xf]
    %v1212 = vld [vmem:[#allocation9 + $0x230] sm:$0xff]
    %v1213 = vld [vmem:[#allocation9 + $0x238] sm:$0xff]
    %v1214 = vld [vmem:[#allocation9 + $0x240] sm:$0xff]
    %v1215 = vld [vmem:[#allocation9 + $0x248] sm:$0xf]
    %v1216 = vld [vmem:[#allocation9 + $0x24c] sm:$0xff]
    %v1217 = vld [vmem:[#allocation9 + $0x254] sm:$0xff]
    %v1218 = vld [vmem:[#allocation9 + $0x25c] sm:$0xff]
    %v1219 = vld [vmem:[#allocation9 + $0x264] sm:$0xf]
    %v1220 = vld [vmem:[#allocation9 + $0x268] sm:$0xff]
    %v1221 = vld [vmem:[#allocation9 + $0x270] sm:$0xff]
    %v1222 = vld [vmem:[#allocation9 + $0x278] sm:$0xff]
    %v1223 = vld [vmem:[#allocation9 + $0x280] sm:$0xf]
    %v1224 = vld [vmem:[#allocation9 + $0x284] sm:$0xff]
    %v1225 = vld [vmem:[#allocation9 + $0x28c] sm:$0xff]
    %v1226 = vld [vmem:[#allocation9 + $0x294] sm:$0xff]
    %v1227 = vld [vmem:[#allocation9 + $0x29c] sm:$0xf]
    %v1228 = vld [vmem:[#allocation9 + $0x2a0] sm:$0xff]
    %v1229 = vld [vmem:[#allocation9 + $0x2a8] sm:$0xff]
    %v1230 = vld [vmem:[#allocation9 + $0x2b0] sm:$0xff]
    %v1231 = vld [vmem:[#allocation9 + $0x2b8] sm:$0xf]
    %v1232 = vld [vmem:[#allocation9 + $0x2bc] sm:$0xff]
    %v1233 = vld [vmem:[#allocation9 + $0x2c4] sm:$0xff]
    %v1234 = vld [vmem:[#allocation9 + $0x2cc] sm:$0xff]
    %v1235 = vld [vmem:[#allocation9 + $0x2d4] sm:$0xf]
    %v1236 = vld [vmem:[#allocation9 + $0x2d8] sm:$0xff]
    %v1237 = vld [vmem:[#allocation9 + $0x2e0] sm:$0xff]
    %v1238 = vld [vmem:[#allocation9 + $0x2e8] sm:$0xff]
    %v1239 = vld [vmem:[#allocation9 + $0x2f0] sm:$0xf]
    %v1240 = vld [vmem:[#allocation9 + $0x2f4] sm:$0xff]
    %v1241 = vld [vmem:[#allocation9 + $0x2fc] sm:$0xff]
    %v1242 = vld [vmem:[#allocation9 + $0x304] sm:$0xff]
    %v1243 = vld [vmem:[#allocation9 + $0x30c] sm:$0xf]
    %v1244 = vld [vmem:[#allocation9 + $0x310] sm:$0xff]
    %v1245 = vld [vmem:[#allocation9 + $0x318] sm:$0xff]
    %v1246 = vld [vmem:[#allocation9 + $0x320] sm:$0xff]
    %v1247 = vld [vmem:[#allocation9 + $0x328] sm:$0xf]
    %v1248 = vld [vmem:[#allocation9 + $0x32c] sm:$0xff]
    %v1249 = vld [vmem:[#allocation9 + $0x334] sm:$0xff]
    %v1250 = vld [vmem:[#allocation9 + $0x33c] sm:$0xff]
    %v1251 = vld [vmem:[#allocation9 + $0x344] sm:$0xf]
    %v1252 = vld [vmem:[#allocation9 + $0x348] sm:$0xff]
    %v1253 = vld [vmem:[#allocation9 + $0x350] sm:$0xff]
    %v1254 = vld [vmem:[#allocation9 + $0x358] sm:$0xff]
    %v1255 = vld [vmem:[#allocation9 + $0x360] sm:$0xf]
    %v1256 = vld [vmem:[#allocation9 + $0x364] sm:$0xff]
    %v1257 = vld [vmem:[#allocation9 + $0x36c] sm:$0xff]
    %v1258 = vld [vmem:[#allocation9 + $0x374] sm:$0xff]
    %v1259 = vld [vmem:[#allocation9 + $0x37c] sm:$0xf]
    %v1260 = vld [vmem:[#allocation9 + $0x380] sm:$0xff]
    %v1261 = vld [vmem:[#allocation9 + $0x388] sm:$0xff]
    %v1262 = vld [vmem:[#allocation9 + $0x390] sm:$0xff]
    %v1263 = vld [vmem:[#allocation9 + $0x398] sm:$0xf]
    %v1264 = vld [vmem:[#allocation9 + $0x39c] sm:$0xff]
    %v1265 = vld [vmem:[#allocation9 + $0x3a4] sm:$0xff]
    %v1266 = vld [vmem:[#allocation9 + $0x3ac] sm:$0xff]
    %v1267 = vld [vmem:[#allocation9 + $0x3b4] sm:$0xf]
    %v1268 = vld [vmem:[#allocation9 + $0x3b8] sm:$0xff]
    %v1269 = vld [vmem:[#allocation9 + $0x3c0] sm:$0xff]
    %v1270 = vld [vmem:[#allocation9 + $0x3c8] sm:$0xff]
    %v1271 = vld [vmem:[#allocation9 + $0x3d0] sm:$0xf]
    %v1272 = vld [vmem:[#allocation9 + $0x3d4] sm:$0xff]
    %v1273 = vld [vmem:[#allocation9 + $0x3dc] sm:$0xff]
    %v1274 = vld [vmem:[#allocation9 + $0x3e4] sm:$0xff]
    %v1275 = vld [vmem:[#allocation9 + $0x3ec] sm:$0xf]
    %v1276 = vld [vmem:[#allocation9 + $0x3f0] sm:$0xff]
    %v1277 = vld [vmem:[#allocation9 + $0x3f8] sm:$0xff]
    %v1278 = vld [vmem:[#allocation9 + $0x400] sm:$0xff]
    %v1279 = vld [vmem:[#allocation9 + $0x408] sm:$0xf]
    %v1280 = vld [vmem:[#allocation9 + $0x40c] sm:$0xff]
    %v1281 = vld [vmem:[#allocation9 + $0x414] sm:$0xff]
    %v1282 = vld [vmem:[#allocation9 + $0x41c] sm:$0xff]
    %v1283 = vld [vmem:[#allocation9 + $0x424] sm:$0xf]
    %v1284 = vld [vmem:[#allocation9 + $0x428] sm:$0xff]
    %v1285 = vld [vmem:[#allocation9 + $0x430] sm:$0xff]
    %v1286 = vld [vmem:[#allocation9 + $0x438] sm:$0xff]
    %v1287 = vld [vmem:[#allocation9 + $0x440] sm:$0xf]
    %v1288 = vld [vmem:[#allocation9 + $0x444] sm:$0xff]
    %v1289 = vld [vmem:[#allocation9 + $0x44c] sm:$0xff]
    %v1290 = vld [vmem:[#allocation9 + $0x454] sm:$0xff]
    %v1291 = vld [vmem:[#allocation9 + $0x45c] sm:$0xf]
    %v1292 = vld [vmem:[#allocation9 + $0x460] sm:$0xff]
    %v1293 = vld [vmem:[#allocation9 + $0x468] sm:$0xff]
    %v1294 = vld [vmem:[#allocation9 + $0x470] sm:$0xff]
    %v1295 = vld [vmem:[#allocation9 + $0x478] sm:$0xf]
    %v1296 = vld [vmem:[#allocation9 + $0x47c] sm:$0xff]
    %v1297 = vld [vmem:[#allocation9 + $0x484] sm:$0xff]
    %v1298 = vld [vmem:[#allocation9 + $0x48c] sm:$0xff]
    %v1299 = vld [vmem:[#allocation9 + $0x494] sm:$0xf]
    %v1300 = vld [vmem:[#allocation9 + $0x498] sm:$0xff]
    %v1301 = vld [vmem:[#allocation9 + $0x4a0] sm:$0xff]
    %v1302 = vld [vmem:[#allocation9 + $0x4a8] sm:$0xff]
    %v1303 = vld [vmem:[#allocation9 + $0x4b0] sm:$0xf]
    %v1304 = vld [vmem:[#allocation9 + $0x4b4] sm:$0xff]
    %v1305 = vld [vmem:[#allocation9 + $0x4bc] sm:$0xff]
    %v1306 = vld [vmem:[#allocation9 + $0x4c4] sm:$0xff]
    %v1307 = vld [vmem:[#allocation9 + $0x4cc] sm:$0xf]
    %v1308 = vld [vmem:[#allocation9 + $0x4d0] sm:$0xff]
    %v1309 = vld [vmem:[#allocation9 + $0x4d8] sm:$0xff]
    %v1310 = vld [vmem:[#allocation9 + $0x4e0] sm:$0xff]
    %v1311 = vld [vmem:[#allocation9 + $0x4e8] sm:$0xf]
    %v1312 = vld [vmem:[#allocation9 + $0x4ec] sm:$0xff]
    %v1313 = vld [vmem:[#allocation9 + $0x4f4] sm:$0xff]
    %v1314 = vld [vmem:[#allocation9 + $0x4fc] sm:$0xff]
    %v1315 = vld [vmem:[#allocation9 + $0x504] sm:$0xf]
    %v1316 = vld [vmem:[#allocation9 + $0x508] sm:$0xff]
    %v1317 = vld [vmem:[#allocation9 + $0x510] sm:$0xff]
    %v1318 = vld [vmem:[#allocation9 + $0x518] sm:$0xff]
    %v1319 = vld [vmem:[#allocation9 + $0x520] sm:$0xf]
    %v1320 = vld [vmem:[#allocation9 + $0x524] sm:$0xff]
    %v1321 = vld [vmem:[#allocation9 + $0x52c] sm:$0xff]
    %v1322 = vld [vmem:[#allocation9 + $0x534] sm:$0xff]
    %v1323 = vld [vmem:[#allocation9 + $0x53c] sm:$0xf]
    %v1324 = vld [vmem:[#allocation9 + $0x540] sm:$0xff]
    %v1325 = vld [vmem:[#allocation9 + $0x548] sm:$0xff]
    %v1326 = vld [vmem:[#allocation9 + $0x550] sm:$0xff]
    %v1327 = vld [vmem:[#allocation9 + $0x558] sm:$0xf]
    %v1328 = vld [vmem:[#allocation9 + $0x55c] sm:$0xff]
    %v1329 = vld [vmem:[#allocation9 + $0x564] sm:$0xff]
    %v1330 = vld [vmem:[#allocation9 + $0x56c] sm:$0xff]
    %v1331 = vld [vmem:[#allocation9 + $0x574] sm:$0xf]
    %v1332 = vld [vmem:[#allocation9 + $0x578] sm:$0xff]
    %v1333 = vld [vmem:[#allocation9 + $0x580] sm:$0xff]
    %v1334 = vld [vmem:[#allocation9 + $0x588] sm:$0xff]
    %v1335 = vld [vmem:[#allocation9 + $0x590] sm:$0xf]
    %v1336 = vld [vmem:[#allocation9 + $0x594] sm:$0xff]
    %v1337 = vld [vmem:[#allocation9 + $0x59c] sm:$0xff]
    %v1338 = vld [vmem:[#allocation9 + $0x5a4] sm:$0xff]
    %v1339 = vld [vmem:[#allocation9 + $0x5ac] sm:$0xf]
    %v1340 = vld [vmem:[#allocation9 + $0x5b0] sm:$0xff]
    %v1341 = vld [vmem:[#allocation9 + $0x5b8] sm:$0xff]
    %v1342 = vld [vmem:[#allocation9 + $0x5c0] sm:$0xff]
    %v1343 = vld [vmem:[#allocation9 + $0x5c8] sm:$0xf]
    %v1344 = vld [vmem:[#allocation9 + $0x5cc] sm:$0xff]
    %v1345 = vld [vmem:[#allocation9 + $0x5d4] sm:$0xff]
    %v1346 = vld [vmem:[#allocation9 + $0x5dc] sm:$0xff]
    %v1347 = vld [vmem:[#allocation9 + $0x5e4] sm:$0xf]
    %v1348 = vld [vmem:[#allocation9 + $0x5e8] sm:$0xff]
    %v1349 = vld [vmem:[#allocation9 + $0x5f0] sm:$0xff]
    %v1350 = vld [vmem:[#allocation9 + $0x5f8] sm:$0xff]
    %v1351 = vld [vmem:[#allocation9 + $0x600] sm:$0xf]
    %v1352 = vld [vmem:[#allocation9 + $0x604] sm:$0xff]
    %v1353 = vld [vmem:[#allocation9 + $0x60c] sm:$0xff]
    %v1354 = vld [vmem:[#allocation9 + $0x614] sm:$0xff]
    %v1355 = vld [vmem:[#allocation9 + $0x61c] sm:$0xf]
    %v1356 = vld [vmem:[#allocation9 + $0x620] sm:$0xff]
    %v1357 = vld [vmem:[#allocation9 + $0x628] sm:$0xff]
    %v1358 = vld [vmem:[#allocation9 + $0x630] sm:$0xff]
    %v1359 = vld [vmem:[#allocation9 + $0x638] sm:$0xf]
    %v1360 = vld [vmem:[#allocation9 + $0x63c] sm:$0xff]
    %v1361 = vld [vmem:[#allocation9 + $0x644] sm:$0xff]
    %v1362 = vld [vmem:[#allocation9 + $0x64c] sm:$0xff]
    %v1363 = vld [vmem:[#allocation9 + $0x654] sm:$0xf]
    %v1364 = vld [vmem:[#allocation9 + $0x658] sm:$0xff]
    %v1365 = vld [vmem:[#allocation9 + $0x660] sm:$0xff]
    %v1366 = vld [vmem:[#allocation9 + $0x668] sm:$0xff]
    %v1367 = vld [vmem:[#allocation9 + $0x670] sm:$0xf]
    %v1368 = vld [vmem:[#allocation9 + $0x674] sm:$0xff]
    %v1369 = vld [vmem:[#allocation9 + $0x67c] sm:$0xff]
    %v1370 = vld [vmem:[#allocation9 + $0x684] sm:$0xff]
    %v1371 = vld [vmem:[#allocation9 + $0x68c] sm:$0xf]
    %v1372 = vld [vmem:[#allocation9 + $0x690] sm:$0xff]
    %v1373 = vld [vmem:[#allocation9 + $0x698] sm:$0xff]
    %v1374 = vld [vmem:[#allocation9 + $0x6a0] sm:$0xff]
    %v1375 = vld [vmem:[#allocation9 + $0x6a8] sm:$0xf]
    %v1376 = vld [vmem:[#allocation9 + $0x6ac] sm:$0xff]
    %v1377 = vld [vmem:[#allocation9 + $0x6b4] sm:$0xff]
    %v1378 = vld [vmem:[#allocation9 + $0x6bc] sm:$0xff]
    %v1379 = vld [vmem:[#allocation9 + $0x6c4] sm:$0xf]
    %v1380 = vld [vmem:[#allocation9 + $0x6c8] sm:$0xff]
    %v1381 = vld [vmem:[#allocation9 + $0x6d0] sm:$0xff]
    %v1382 = vld [vmem:[#allocation9 + $0x6d8] sm:$0xff]
    %v1383 = vld [vmem:[#allocation9 + $0x6e0] sm:$0xf]
    %v1384 = vld [vmem:[#allocation9 + $0x6e4] sm:$0xff]
    %v1385 = vld [vmem:[#allocation9 + $0x6ec] sm:$0xff]
    %v1386 = vld [vmem:[#allocation9 + $0x6f4] sm:$0xff]
    %v1387 = vld [vmem:[#allocation9 + $0x6fc] sm:$0xf]
    %v1388 = vld [vmem:[%s7 + $0x13] sm:$0xff]
    %v1390 = vlaneseq
    %v1391 = vshrl.u32 %v1390, 7
    %v1392 = vsub.s32 0, %v1391
    %v1393 = vrot.slane %v1388, %v1392
    %v1394 = vlaneseq
    %v1395 = vshrl.u32 %v1394, 7
    %v1396 = vsub.s32 1, %v1395
    %v1397 = vrot.slane %v1388, %v1396
    %v1398 = vlaneseq
    %v1399 = vshrl.u32 %v1398, 7
    %v1400 = vsub.s32 2, %v1399
    %v1401 = vrot.slane %v1388, %v1400
    %v1402 = vlaneseq
    %v1403 = vshrl.u32 %v1402, 7
    %v1404 = vsub.s32 3, %v1403
    %v1405 = vrot.slane %v1388, %v1404
    %v1406 = vlaneseq
    %v1407 = vshrl.u32 %v1406, 7
    %v1408 = vsub.s32 4, %v1407
    %v1409 = vrot.slane %v1388, %v1408
    %v1410 = vlaneseq
    %v1411 = vshrl.u32 %v1410, 7
    %v1412 = vsub.s32 5, %v1411
    %v1413 = vrot.slane %v1388, %v1412
    %v1414 = vlaneseq
    %v1415 = vshrl.u32 %v1414, 7
    %v1416 = vsub.s32 6, %v1415
    %v1417 = vrot.slane %v1388, %v1416
    %v1681 = vunpack.c.l.b16 %v1132
    %v1682 = vunpack.c.h.b16 %v1132
    %v1683 = vunpack.c.l.b16 %v1133
    %v1684 = vunpack.c.h.b16 %v1133
    %v1685 = vunpack.c.l.b16 %v1134
    %v1686 = vunpack.c.h.b16 %v1134
    %v1687 = vunpack.c.l.b16 %v1135
    %v1688 = vunpack.c.l.b16 %v1136
    %v1689 = vunpack.c.h.b16 %v1136
    %v1690 = vunpack.c.l.b16 %v1137
    %v1691 = vunpack.c.h.b16 %v1137
    %v1692 = vunpack.c.l.b16 %v1138
    %v1693 = vunpack.c.h.b16 %v1138
    %v1694 = vunpack.c.l.b16 %v1139
    %v1695 = vunpack.c.l.b16 %v1140
    %v1696 = vunpack.c.h.b16 %v1140
    %v1697 = vunpack.c.l.b16 %v1141
    %v1698 = vunpack.c.h.b16 %v1141
    %v1699 = vunpack.c.l.b16 %v1142
    %v1700 = vunpack.c.h.b16 %v1142
    %v1701 = vunpack.c.l.b16 %v1143
    %v1702 = vunpack.c.l.b16 %v1144
    %v1703 = vunpack.c.h.b16 %v1144
    %v1704 = vunpack.c.l.b16 %v1145
    %v1705 = vunpack.c.h.b16 %v1145
    %v1706 = vunpack.c.l.b16 %v1146
    %v1707 = vunpack.c.h.b16 %v1146
    %v1708 = vunpack.c.l.b16 %v1147
    %v1709 = vunpack.c.l.b16 %v1148
    %v1710 = vunpack.c.h.b16 %v1148
    %v1711 = vunpack.c.l.b16 %v1149
    %v1712 = vunpack.c.h.b16 %v1149
    %v1713 = vunpack.c.l.b16 %v1150
    %v1714 = vunpack.c.h.b16 %v1150
    %v1715 = vunpack.c.l.b16 %v1151
    %v1716 = vunpack.c.l.b16 %v1152
    %v1717 = vunpack.c.h.b16 %v1152
    %v1718 = vunpack.c.l.b16 %v1153
    %v1719 = vunpack.c.h.b16 %v1153
    %v1720 = vunpack.c.l.b16 %v1154
    %v1721 = vunpack.c.h.b16 %v1154
    %v1722 = vunpack.c.l.b16 %v1155
    %v1723 = vunpack.c.l.b16 %v1156
    %v1724 = vunpack.c.h.b16 %v1156
    %v1725 = vunpack.c.l.b16 %v1157
    %v1726 = vunpack.c.h.b16 %v1157
    %v1727 = vunpack.c.l.b16 %v1158
    %v1728 = vunpack.c.h.b16 %v1158
    %v1729 = vunpack.c.l.b16 %v1159
    %v1730 = vunpack.c.l.b16 %v1160
    %v1731 = vunpack.c.h.b16 %v1160
    %v1732 = vunpack.c.l.b16 %v1161
    %v1733 = vunpack.c.h.b16 %v1161
    %v1734 = vunpack.c.l.b16 %v1162
    %v1735 = vunpack.c.h.b16 %v1162
    %v1736 = vunpack.c.l.b16 %v1163
    %v1737 = vunpack.c.l.b16 %v1164
    %v1738 = vunpack.c.h.b16 %v1164
    %v1739 = vunpack.c.l.b16 %v1165
    %v1740 = vunpack.c.h.b16 %v1165
    %v1741 = vunpack.c.l.b16 %v1166
    %v1742 = vunpack.c.h.b16 %v1166
    %v1743 = vunpack.c.l.b16 %v1167
    %v1744 = vunpack.c.l.b16 %v1168
    %v1745 = vunpack.c.h.b16 %v1168
    %v1746 = vunpack.c.l.b16 %v1169
    %v1747 = vunpack.c.h.b16 %v1169
    %v1748 = vunpack.c.l.b16 %v1170
    %v1749 = vunpack.c.h.b16 %v1170
    %v1750 = vunpack.c.l.b16 %v1171
    %v1751 = vunpack.c.l.b16 %v1172
    %v1752 = vunpack.c.h.b16 %v1172
    %v1753 = vunpack.c.l.b16 %v1173
    %v1754 = vunpack.c.h.b16 %v1173
    %v1755 = vunpack.c.l.b16 %v1174
    %v1756 = vunpack.c.h.b16 %v1174
    %v1757 = vunpack.c.l.b16 %v1175
    %v1758 = vunpack.c.l.b16 %v1176
    %v1759 = vunpack.c.h.b16 %v1176
    %v1760 = vunpack.c.l.b16 %v1177
    %v1761 = vunpack.c.h.b16 %v1177
    %v1762 = vunpack.c.l.b16 %v1178
    %v1763 = vunpack.c.h.b16 %v1178
    %v1764 = vunpack.c.l.b16 %v1179
    %v1765 = vunpack.c.l.b16 %v1180
    %v1766 = vunpack.c.h.b16 %v1180
    %v1767 = vunpack.c.l.b16 %v1181
    %v1768 = vunpack.c.h.b16 %v1181
    %v1769 = vunpack.c.l.b16 %v1182
    %v1770 = vunpack.c.h.b16 %v1182
    %v1771 = vunpack.c.l.b16 %v1183
    %v1772 = vunpack.c.l.b16 %v1184
    %v1773 = vunpack.c.h.b16 %v1184
    %v1774 = vunpack.c.l.b16 %v1185
    %v1775 = vunpack.c.h.b16 %v1185
    %v1776 = vunpack.c.l.b16 %v1186
    %v1777 = vunpack.c.h.b16 %v1186
    %v1778 = vunpack.c.l.b16 %v1187
    %v1779 = vunpack.c.l.b16 %v1188
    %v1780 = vunpack.c.h.b16 %v1188
    %v1781 = vunpack.c.l.b16 %v1189
    %v1782 = vunpack.c.h.b16 %v1189
    %v1783 = vunpack.c.l.b16 %v1190
    %v1784 = vunpack.c.h.b16 %v1190
    %v1785 = vunpack.c.l.b16 %v1191
    %v1786 = vunpack.c.l.b16 %v1192
    %v1787 = vunpack.c.h.b16 %v1192
    %v1788 = vunpack.c.l.b16 %v1193
    %v1789 = vunpack.c.h.b16 %v1193
    %v1790 = vunpack.c.l.b16 %v1194
    %v1791 = vunpack.c.h.b16 %v1194
    %v1792 = vunpack.c.l.b16 %v1195
    %v1793 = vunpack.c.l.b16 %v1196
    %v1794 = vunpack.c.h.b16 %v1196
    %v1795 = vunpack.c.l.b16 %v1197
    %v1796 = vunpack.c.h.b16 %v1197
    %v1797 = vunpack.c.l.b16 %v1198
    %v1798 = vunpack.c.h.b16 %v1198
    %v1799 = vunpack.c.l.b16 %v1199
    %v1800 = vunpack.c.l.b16 %v1200
    %v1801 = vunpack.c.h.b16 %v1200
    %v1802 = vunpack.c.l.b16 %v1201
    %v1803 = vunpack.c.h.b16 %v1201
    %v1804 = vunpack.c.l.b16 %v1202
    %v1805 = vunpack.c.h.b16 %v1202
    %v1806 = vunpack.c.l.b16 %v1203
    %v1807 = vunpack.c.l.b16 %v1204
    %v1808 = vunpack.c.h.b16 %v1204
    %v1809 = vunpack.c.l.b16 %v1205
    %v1810 = vunpack.c.h.b16 %v1205
    %v1811 = vunpack.c.l.b16 %v1206
    %v1812 = vunpack.c.h.b16 %v1206
    %v1813 = vunpack.c.l.b16 %v1207
    %v1814 = vunpack.c.l.b16 %v1208
    %v1815 = vunpack.c.h.b16 %v1208
    %v1816 = vunpack.c.l.b16 %v1209
    %v1817 = vunpack.c.h.b16 %v1209
    %v1818 = vunpack.c.l.b16 %v1210
    %v1819 = vunpack.c.h.b16 %v1210
    %v1820 = vunpack.c.l.b16 %v1211
    %v1821 = vunpack.c.l.b16 %v1212
    %v1822 = vunpack.c.h.b16 %v1212
    %v1823 = vunpack.c.l.b16 %v1213
    %v1824 = vunpack.c.h.b16 %v1213
    %v1825 = vunpack.c.l.b16 %v1214
    %v1826 = vunpack.c.h.b16 %v1214
    %v1827 = vunpack.c.l.b16 %v1215
    %v1828 = vunpack.c.l.b16 %v1216
    %v1829 = vunpack.c.h.b16 %v1216
    %v1830 = vunpack.c.l.b16 %v1217
    %v1831 = vunpack.c.h.b16 %v1217
    %v1832 = vunpack.c.l.b16 %v1218
    %v1833 = vunpack.c.h.b16 %v1218
    %v1834 = vunpack.c.l.b16 %v1219
    %v1835 = vunpack.c.l.b16 %v1220
    %v1836 = vunpack.c.h.b16 %v1220
    %v1837 = vunpack.c.l.b16 %v1221
    %v1838 = vunpack.c.h.b16 %v1221
    %v1839 = vunpack.c.l.b16 %v1222
    %v1840 = vunpack.c.h.b16 %v1222
    %v1841 = vunpack.c.l.b16 %v1223
    %v1842 = vunpack.c.l.b16 %v1224
    %v1843 = vunpack.c.h.b16 %v1224
    %v1844 = vunpack.c.l.b16 %v1225
    %v1845 = vunpack.c.h.b16 %v1225
    %v1846 = vunpack.c.l.b16 %v1226
    %v1847 = vunpack.c.h.b16 %v1226
    %v1848 = vunpack.c.l.b16 %v1227
    %v1849 = vunpack.c.l.b16 %v1228
    %v1850 = vunpack.c.h.b16 %v1228
    %v1851 = vunpack.c.l.b16 %v1229
    %v1852 = vunpack.c.h.b16 %v1229
    %v1853 = vunpack.c.l.b16 %v1230
    %v1854 = vunpack.c.h.b16 %v1230
    %v1855 = vunpack.c.l.b16 %v1231
    %v1856 = vunpack.c.l.b16 %v1232
    %v1857 = vunpack.c.h.b16 %v1232
    %v1858 = vunpack.c.l.b16 %v1233
    %v1859 = vunpack.c.h.b16 %v1233
    %v1860 = vunpack.c.l.b16 %v1234
    %v1861 = vunpack.c.h.b16 %v1234
    %v1862 = vunpack.c.l.b16 %v1235
    %v1863 = vunpack.c.l.b16 %v1236
    %v1864 = vunpack.c.h.b16 %v1236
    %v1865 = vunpack.c.l.b16 %v1237
    %v1866 = vunpack.c.h.b16 %v1237
    %v1867 = vunpack.c.l.b16 %v1238
    %v1868 = vunpack.c.h.b16 %v1238
    %v1869 = vunpack.c.l.b16 %v1239
    %v1870 = vunpack.c.l.b16 %v1240
    %v1871 = vunpack.c.h.b16 %v1240
    %v1872 = vunpack.c.l.b16 %v1241
    %v1873 = vunpack.c.h.b16 %v1241
    %v1874 = vunpack.c.l.b16 %v1242
    %v1875 = vunpack.c.h.b16 %v1242
    %v1876 = vunpack.c.l.b16 %v1243
    %v1877 = vunpack.c.l.b16 %v1244
    %v1878 = vunpack.c.h.b16 %v1244
    %v1879 = vunpack.c.l.b16 %v1245
    %v1880 = vunpack.c.h.b16 %v1245
    %v1881 = vunpack.c.l.b16 %v1246
    %v1882 = vunpack.c.h.b16 %v1246
    %v1883 = vunpack.c.l.b16 %v1247
    %v1884 = vunpack.c.l.b16 %v1248
    %v1885 = vunpack.c.h.b16 %v1248
    %v1886 = vunpack.c.l.b16 %v1249
    %v1887 = vunpack.c.h.b16 %v1249
    %v1888 = vunpack.c.l.b16 %v1250
    %v1889 = vunpack.c.h.b16 %v1250
    %v1890 = vunpack.c.l.b16 %v1251
    %v1891 = vunpack.c.l.b16 %v1252
    %v1892 = vunpack.c.h.b16 %v1252
    %v1893 = vunpack.c.l.b16 %v1253
    %v1894 = vunpack.c.h.b16 %v1253
    %v1895 = vunpack.c.l.b16 %v1254
    %v1896 = vunpack.c.h.b16 %v1254
    %v1897 = vunpack.c.l.b16 %v1255
    %v1898 = vunpack.c.l.b16 %v1256
    %v1899 = vunpack.c.h.b16 %v1256
    %v1900 = vunpack.c.l.b16 %v1257
    %v1901 = vunpack.c.h.b16 %v1257
    %v1902 = vunpack.c.l.b16 %v1258
    %v1903 = vunpack.c.h.b16 %v1258
    %v1904 = vunpack.c.l.b16 %v1259
    %v1905 = vunpack.c.l.b16 %v1260
    %v1906 = vunpack.c.h.b16 %v1260
    %v1907 = vunpack.c.l.b16 %v1261
    %v1908 = vunpack.c.h.b16 %v1261
    %v1909 = vunpack.c.l.b16 %v1262
    %v1910 = vunpack.c.h.b16 %v1262
    %v1911 = vunpack.c.l.b16 %v1263
    %v1912 = vunpack.c.l.b16 %v1264
    %v1913 = vunpack.c.h.b16 %v1264
    %v1914 = vunpack.c.l.b16 %v1265
    %v1915 = vunpack.c.h.b16 %v1265
    %v1916 = vunpack.c.l.b16 %v1266
    %v1917 = vunpack.c.h.b16 %v1266
    %v1918 = vunpack.c.l.b16 %v1267
    %v1919 = vunpack.c.l.b16 %v1268
    %v1920 = vunpack.c.h.b16 %v1268
    %v1921 = vunpack.c.l.b16 %v1269
    %v1922 = vunpack.c.h.b16 %v1269
    %v1923 = vunpack.c.l.b16 %v1270
    %v1924 = vunpack.c.h.b16 %v1270
    %v1925 = vunpack.c.l.b16 %v1271
    %v1926 = vunpack.c.l.b16 %v1272
    %v1927 = vunpack.c.h.b16 %v1272
    %v1928 = vunpack.c.l.b16 %v1273
    %v1929 = vunpack.c.h.b16 %v1273
    %v1930 = vunpack.c.l.b16 %v1274
    %v1931 = vunpack.c.h.b16 %v1274
    %v1932 = vunpack.c.l.b16 %v1275
    %v1933 = vunpack.c.l.b16 %v1276
    %v1934 = vunpack.c.h.b16 %v1276
    %v1935 = vunpack.c.l.b16 %v1277
    %v1936 = vunpack.c.h.b16 %v1277
    %v1937 = vunpack.c.l.b16 %v1278
    %v1938 = vunpack.c.h.b16 %v1278
    %v1939 = vunpack.c.l.b16 %v1279
    %v1940 = vunpack.c.l.b16 %v1280
    %v1941 = vunpack.c.h.b16 %v1280
    %v1942 = vunpack.c.l.b16 %v1281
    %v1943 = vunpack.c.h.b16 %v1281
    %v1944 = vunpack.c.l.b16 %v1282
    %v1945 = vunpack.c.h.b16 %v1282
    %v1946 = vunpack.c.l.b16 %v1283
    %v1947 = vunpack.c.l.b16 %v1284
    %v1948 = vunpack.c.h.b16 %v1284
    %v1949 = vunpack.c.l.b16 %v1285
    %v1950 = vunpack.c.h.b16 %v1285
    %v1951 = vunpack.c.l.b16 %v1286
    %v1952 = vunpack.c.h.b16 %v1286
    %v1953 = vunpack.c.l.b16 %v1287
    %v1954 = vunpack.c.l.b16 %v1288
    %v1955 = vunpack.c.h.b16 %v1288
    %v1956 = vunpack.c.l.b16 %v1289
    %v1957 = vunpack.c.h.b16 %v1289
    %v1958 = vunpack.c.l.b16 %v1290
    %v1959 = vunpack.c.h.b16 %v1290
    %v1960 = vunpack.c.l.b16 %v1291
    %v1961 = vunpack.c.l.b16 %v1292
    %v1962 = vunpack.c.h.b16 %v1292
    %v1963 = vunpack.c.l.b16 %v1293
    %v1964 = vunpack.c.h.b16 %v1293
    %v1965 = vunpack.c.l.b16 %v1294
    %v1966 = vunpack.c.h.b16 %v1294
    %v1967 = vunpack.c.l.b16 %v1295
    %v1968 = vunpack.c.l.b16 %v1296
    %v1969 = vunpack.c.h.b16 %v1296
    %v1970 = vunpack.c.l.b16 %v1297
    %v1971 = vunpack.c.h.b16 %v1297
    %v1972 = vunpack.c.l.b16 %v1298
    %v1973 = vunpack.c.h.b16 %v1298
    %v1974 = vunpack.c.l.b16 %v1299
    %v1975 = vunpack.c.l.b16 %v1300
    %v1976 = vunpack.c.h.b16 %v1300
    %v1977 = vunpack.c.l.b16 %v1301
    %v1978 = vunpack.c.h.b16 %v1301
    %v1979 = vunpack.c.l.b16 %v1302
    %v1980 = vunpack.c.h.b16 %v1302
    %v1981 = vunpack.c.l.b16 %v1303
    %v1982 = vunpack.c.l.b16 %v1304
    %v1983 = vunpack.c.h.b16 %v1304
    %v1984 = vunpack.c.l.b16 %v1305
    %v1985 = vunpack.c.h.b16 %v1305
    %v1986 = vunpack.c.l.b16 %v1306
    %v1987 = vunpack.c.h.b16 %v1306
    %v1988 = vunpack.c.l.b16 %v1307
    %v1989 = vunpack.c.l.b16 %v1308
    %v1990 = vunpack.c.h.b16 %v1308
    %v1991 = vunpack.c.l.b16 %v1309
    %v1992 = vunpack.c.h.b16 %v1309
    %v1993 = vunpack.c.l.b16 %v1310
    %v1994 = vunpack.c.h.b16 %v1310
    %v1995 = vunpack.c.l.b16 %v1311
    %v1996 = vunpack.c.l.b16 %v1312
    %v1997 = vunpack.c.h.b16 %v1312
    %v1998 = vunpack.c.l.b16 %v1313
    %v1999 = vunpack.c.h.b16 %v1313
    %v2000 = vunpack.c.l.b16 %v1314
    %v2001 = vunpack.c.h.b16 %v1314
    %v2002 = vunpack.c.l.b16 %v1315
    %v2003 = vunpack.c.l.b16 %v1316
    %v2004 = vunpack.c.h.b16 %v1316
    %v2005 = vunpack.c.l.b16 %v1317
    %v2006 = vunpack.c.h.b16 %v1317
    %v2007 = vunpack.c.l.b16 %v1318
    %v2008 = vunpack.c.h.b16 %v1318
    %v2009 = vunpack.c.l.b16 %v1319
    %v2010 = vunpack.c.l.b16 %v1320
    %v2011 = vunpack.c.h.b16 %v1320
    %v2012 = vunpack.c.l.b16 %v1321
    %v2013 = vunpack.c.h.b16 %v1321
    %v2014 = vunpack.c.l.b16 %v1322
    %v2015 = vunpack.c.h.b16 %v1322
    %v2016 = vunpack.c.l.b16 %v1323
    %v2017 = vunpack.c.l.b16 %v1324
    %v2018 = vunpack.c.h.b16 %v1324
    %v2019 = vunpack.c.l.b16 %v1325
    %v2020 = vunpack.c.h.b16 %v1325
    %v2021 = vunpack.c.l.b16 %v1326
    %v2022 = vunpack.c.h.b16 %v1326
    %v2023 = vunpack.c.l.b16 %v1327
    %v2024 = vunpack.c.l.b16 %v1328
    %v2025 = vunpack.c.h.b16 %v1328
    %v2026 = vunpack.c.l.b16 %v1329
    %v2027 = vunpack.c.h.b16 %v1329
    %v2028 = vunpack.c.l.b16 %v1330
    %v2029 = vunpack.c.h.b16 %v1330
    %v2030 = vunpack.c.l.b16 %v1331
    %v2031 = vunpack.c.l.b16 %v1332
    %v2032 = vunpack.c.h.b16 %v1332
    %v2033 = vunpack.c.l.b16 %v1333
    %v2034 = vunpack.c.h.b16 %v1333
    %v2035 = vunpack.c.l.b16 %v1334
    %v2036 = vunpack.c.h.b16 %v1334
    %v2037 = vunpack.c.l.b16 %v1335
    %v2038 = vunpack.c.l.b16 %v1336
    %v2039 = vunpack.c.h.b16 %v1336
    %v2040 = vunpack.c.l.b16 %v1337
    %v2041 = vunpack.c.h.b16 %v1337
    %v2042 = vunpack.c.l.b16 %v1338
    %v2043 = vunpack.c.h.b16 %v1338
    %v2044 = vunpack.c.l.b16 %v1339
    %v2045 = vunpack.c.l.b16 %v1340
    %v2046 = vunpack.c.h.b16 %v1340
    %v2047 = vunpack.c.l.b16 %v1341
    %v2048 = vunpack.c.h.b16 %v1341
    %v2049 = vunpack.c.l.b16 %v1342
    %v2050 = vunpack.c.h.b16 %v1342
    %v2051 = vunpack.c.l.b16 %v1343
    %v2052 = vunpack.c.l.b16 %v1344
    %v2053 = vunpack.c.h.b16 %v1344
    %v2054 = vunpack.c.l.b16 %v1345
    %v2055 = vunpack.c.h.b16 %v1345
    %v2056 = vunpack.c.l.b16 %v1346
    %v2057 = vunpack.c.h.b16 %v1346
    %v2058 = vunpack.c.l.b16 %v1347
    %v2059 = vunpack.c.l.b16 %v1348
    %v2060 = vunpack.c.h.b16 %v1348
    %v2061 = vunpack.c.l.b16 %v1349
    %v2062 = vunpack.c.h.b16 %v1349
    %v2063 = vunpack.c.l.b16 %v1350
    %v2064 = vunpack.c.h.b16 %v1350
    %v2065 = vunpack.c.l.b16 %v1351
    %v2066 = vunpack.c.l.b16 %v1352
    %v2067 = vunpack.c.h.b16 %v1352
    %v2068 = vunpack.c.l.b16 %v1353
    %v2069 = vunpack.c.h.b16 %v1353
    %v2070 = vunpack.c.l.b16 %v1354
    %v2071 = vunpack.c.h.b16 %v1354
    %v2072 = vunpack.c.l.b16 %v1355
    %v2073 = vunpack.c.l.b16 %v1356
    %v2074 = vunpack.c.h.b16 %v1356
    %v2075 = vunpack.c.l.b16 %v1357
    %v2076 = vunpack.c.h.b16 %v1357
    %v2077 = vunpack.c.l.b16 %v1358
    %v2078 = vunpack.c.h.b16 %v1358
    %v2079 = vunpack.c.l.b16 %v1359
    %v2080 = vunpack.c.l.b16 %v1360
    %v2081 = vunpack.c.h.b16 %v1360
    %v2082 = vunpack.c.l.b16 %v1361
    %v2083 = vunpack.c.h.b16 %v1361
    %v2084 = vunpack.c.l.b16 %v1362
    %v2085 = vunpack.c.h.b16 %v1362
    %v2086 = vunpack.c.l.b16 %v1363
    %v2087 = vunpack.c.l.b16 %v1364
    %v2088 = vunpack.c.h.b16 %v1364
    %v2089 = vunpack.c.l.b16 %v1365
    %v2090 = vunpack.c.h.b16 %v1365
    %v2091 = vunpack.c.l.b16 %v1366
    %v2092 = vunpack.c.h.b16 %v1366
    %v2093 = vunpack.c.l.b16 %v1367
    %v2094 = vunpack.c.l.b16 %v1368
    %v2095 = vunpack.c.h.b16 %v1368
    %v2096 = vunpack.c.l.b16 %v1369
    %v2097 = vunpack.c.h.b16 %v1369
    %v2098 = vunpack.c.l.b16 %v1370
    %v2099 = vunpack.c.h.b16 %v1370
    %v2100 = vunpack.c.l.b16 %v1371
    %v2101 = vunpack.c.l.b16 %v1372
    %v2102 = vunpack.c.h.b16 %v1372
    %v2103 = vunpack.c.l.b16 %v1373
    %v2104 = vunpack.c.h.b16 %v1373
    %v2105 = vunpack.c.l.b16 %v1374
    %v2106 = vunpack.c.h.b16 %v1374
    %v2107 = vunpack.c.l.b16 %v1375
    %v2108 = vunpack.c.l.b16 %v1376
    %v2109 = vunpack.c.h.b16 %v1376
    %v2110 = vunpack.c.l.b16 %v1377
    %v2111 = vunpack.c.h.b16 %v1377
    %v2112 = vunpack.c.l.b16 %v1378
    %v2113 = vunpack.c.h.b16 %v1378
    %v2114 = vunpack.c.l.b16 %v1379
    %v2115 = vunpack.c.l.b16 %v1380
    %v2116 = vunpack.c.h.b16 %v1380
    %v2117 = vunpack.c.l.b16 %v1381
    %v2118 = vunpack.c.h.b16 %v1381
    %v2119 = vunpack.c.l.b16 %v1382
    %v2120 = vunpack.c.h.b16 %v1382
    %v2121 = vunpack.c.l.b16 %v1383
    %v2122 = vunpack.c.l.b16 %v1384
    %v2123 = vunpack.c.h.b16 %v1384
    %v2124 = vunpack.c.l.b16 %v1385
    %v2125 = vunpack.c.h.b16 %v1385
    %v2126 = vunpack.c.l.b16 %v1386
    %v2127 = vunpack.c.h.b16 %v1386
    %v2128 = vunpack.c.l.b16 %v1387
    %v2129 = vpack.c.b16 %v1688, %v1681
    %v2130 = vpack.c.b16 %v1689, %v1682
    %v2131 = vpack.c.b16 %v1690, %v1683
    %v2132 = vpack.c.b16 %v1691, %v1684
    %v2133 = vpack.c.b16 %v1692, %v1685
    %v2134 = vpack.c.b16 %v1693, %v1686
    %v2135 = vpack.c.b16 %v1694, %v1687
    %v2136 = vpack.c.b16 %v1702, %v1695
    %v2137 = vpack.c.b16 %v1703, %v1696
    %v2138 = vpack.c.b16 %v1704, %v1697
    %v2139 = vpack.c.b16 %v1705, %v1698
    %v2140 = vpack.c.b16 %v1706, %v1699
    %v2141 = vpack.c.b16 %v1707, %v1700
    %v2142 = vpack.c.b16 %v1708, %v1701
    %v2143 = vpack.c.b16 %v1716, %v1709
    %v2144 = vpack.c.b16 %v1717, %v1710
    %v2145 = vpack.c.b16 %v1718, %v1711
    %v2146 = vpack.c.b16 %v1719, %v1712
    %v2147 = vpack.c.b16 %v1720, %v1713
    %v2148 = vpack.c.b16 %v1721, %v1714
    %v2149 = vpack.c.b16 %v1722, %v1715
    %v2150 = vpack.c.b16 %v1730, %v1723
    %v2151 = vpack.c.b16 %v1731, %v1724
    %v2152 = vpack.c.b16 %v1732, %v1725
    %v2153 = vpack.c.b16 %v1733, %v1726
    %v2154 = vpack.c.b16 %v1734, %v1727
    %v2155 = vpack.c.b16 %v1735, %v1728
    %v2156 = vpack.c.b16 %v1736, %v1729
    %v2157 = vpack.c.b16 %v1744, %v1737
    %v2158 = vpack.c.b16 %v1745, %v1738
    %v2159 = vpack.c.b16 %v1746, %v1739
    %v2160 = vpack.c.b16 %v1747, %v1740
    %v2161 = vpack.c.b16 %v1748, %v1741
    %v2162 = vpack.c.b16 %v1749, %v1742
    %v2163 = vpack.c.b16 %v1750, %v1743
    %v2164 = vpack.c.b16 %v1758, %v1751
    %v2165 = vpack.c.b16 %v1759, %v1752
    %v2166 = vpack.c.b16 %v1760, %v1753
    %v2167 = vpack.c.b16 %v1761, %v1754
    %v2168 = vpack.c.b16 %v1762, %v1755
    %v2169 = vpack.c.b16 %v1763, %v1756
    %v2170 = vpack.c.b16 %v1764, %v1757
    %v2171 = vpack.c.b16 %v1772, %v1765
    %v2172 = vpack.c.b16 %v1773, %v1766
    %v2173 = vpack.c.b16 %v1774, %v1767
    %v2174 = vpack.c.b16 %v1775, %v1768
    %v2175 = vpack.c.b16 %v1776, %v1769
    %v2176 = vpack.c.b16 %v1777, %v1770
    %v2177 = vpack.c.b16 %v1778, %v1771
    %v2178 = vpack.c.b16 %v1786, %v1779
    %v2179 = vpack.c.b16 %v1787, %v1780
    %v2180 = vpack.c.b16 %v1788, %v1781
    %v2181 = vpack.c.b16 %v1789, %v1782
    %v2182 = vpack.c.b16 %v1790, %v1783
    %v2183 = vpack.c.b16 %v1791, %v1784
    %v2184 = vpack.c.b16 %v1792, %v1785
    %v2185 = vpack.c.b16 %v1800, %v1793
    %v2186 = vpack.c.b16 %v1801, %v1794
    %v2187 = vpack.c.b16 %v1802, %v1795
    %v2188 = vpack.c.b16 %v1803, %v1796
    %v2189 = vpack.c.b16 %v1804, %v1797
    %v2190 = vpack.c.b16 %v1805, %v1798
    %v2191 = vpack.c.b16 %v1806, %v1799
    %v2192 = vpack.c.b16 %v1814, %v1807
    %v2193 = vpack.c.b16 %v1815, %v1808
    %v2194 = vpack.c.b16 %v1816, %v1809
    %v2195 = vpack.c.b16 %v1817, %v1810
    %v2196 = vpack.c.b16 %v1818, %v1811
    %v2197 = vpack.c.b16 %v1819, %v1812
    %v2198 = vpack.c.b16 %v1820, %v1813
    %v2199 = vpack.c.b16 %v1828, %v1821
    %v2200 = vpack.c.b16 %v1829, %v1822
    %v2201 = vpack.c.b16 %v1830, %v1823
    %v2202 = vpack.c.b16 %v1831, %v1824
    %v2203 = vpack.c.b16 %v1832, %v1825
    %v2204 = vpack.c.b16 %v1833, %v1826
    %v2205 = vpack.c.b16 %v1834, %v1827
    %v2206 = vpack.c.b16 %v1842, %v1835
    %v2207 = vpack.c.b16 %v1843, %v1836
    %v2208 = vpack.c.b16 %v1844, %v1837
    %v2209 = vpack.c.b16 %v1845, %v1838
    %v2210 = vpack.c.b16 %v1846, %v1839
    %v2211 = vpack.c.b16 %v1847, %v1840
    %v2212 = vpack.c.b16 %v1848, %v1841
    %v2213 = vpack.c.b16 %v1856, %v1849
    %v2214 = vpack.c.b16 %v1857, %v1850
    %v2215 = vpack.c.b16 %v1858, %v1851
    %v2216 = vpack.c.b16 %v1859, %v1852
    %v2217 = vpack.c.b16 %v1860, %v1853
    %v2218 = vpack.c.b16 %v1861, %v1854
    %v2219 = vpack.c.b16 %v1862, %v1855
    %v2220 = vpack.c.b16 %v1870, %v1863
    %v2221 = vpack.c.b16 %v1871, %v1864
    %v2222 = vpack.c.b16 %v1872, %v1865
    %v2223 = vpack.c.b16 %v1873, %v1866
    %v2224 = vpack.c.b16 %v1874, %v1867
    %v2225 = vpack.c.b16 %v1875, %v1868
    %v2226 = vpack.c.b16 %v1876, %v1869
    %v2227 = vpack.c.b16 %v1884, %v1877
    %v2228 = vpack.c.b16 %v1885, %v1878
    %v2229 = vpack.c.b16 %v1886, %v1879
    %v2230 = vpack.c.b16 %v1887, %v1880
    %v2231 = vpack.c.b16 %v1888, %v1881
    %v2232 = vpack.c.b16 %v1889, %v1882
    %v2233 = vpack.c.b16 %v1890, %v1883
    %v2234 = vpack.c.b16 %v1898, %v1891
    %v2235 = vpack.c.b16 %v1899, %v1892
    %v2236 = vpack.c.b16 %v1900, %v1893
    %v2237 = vpack.c.b16 %v1901, %v1894
    %v2238 = vpack.c.b16 %v1902, %v1895
    %v2239 = vpack.c.b16 %v1903, %v1896
    %v2240 = vpack.c.b16 %v1904, %v1897
    %v2241 = vpack.c.b16 %v1912, %v1905
    %v2242 = vpack.c.b16 %v1913, %v1906
    %v2243 = vpack.c.b16 %v1914, %v1907
    %v2244 = vpack.c.b16 %v1915, %v1908
    %v2245 = vpack.c.b16 %v1916, %v1909
    %v2246 = vpack.c.b16 %v1917, %v1910
    %v2247 = vpack.c.b16 %v1918, %v1911
    %v2248 = vpack.c.b16 %v1926, %v1919
    %v2249 = vpack.c.b16 %v1927, %v1920
    %v2250 = vpack.c.b16 %v1928, %v1921
    %v2251 = vpack.c.b16 %v1929, %v1922
    %v2252 = vpack.c.b16 %v1930, %v1923
    %v2253 = vpack.c.b16 %v1931, %v1924
    %v2254 = vpack.c.b16 %v1932, %v1925
    %v2255 = vpack.c.b16 %v1940, %v1933
    %v2256 = vpack.c.b16 %v1941, %v1934
    %v2257 = vpack.c.b16 %v1942, %v1935
    %v2258 = vpack.c.b16 %v1943, %v1936
    %v2259 = vpack.c.b16 %v1944, %v1937
    %v2260 = vpack.c.b16 %v1945, %v1938
    %v2261 = vpack.c.b16 %v1946, %v1939
    %v2262 = vpack.c.b16 %v1954, %v1947
    %v2263 = vpack.c.b16 %v1955, %v1948
    %v2264 = vpack.c.b16 %v1956, %v1949
    %v2265 = vpack.c.b16 %v1957, %v1950
    %v2266 = vpack.c.b16 %v1958, %v1951
    %v2267 = vpack.c.b16 %v1959, %v1952
    %v2268 = vpack.c.b16 %v1960, %v1953
    %v2269 = vpack.c.b16 %v1968, %v1961
    %v2270 = vpack.c.b16 %v1969, %v1962
    %v2271 = vpack.c.b16 %v1970, %v1963
    %v2272 = vpack.c.b16 %v1971, %v1964
    %v2273 = vpack.c.b16 %v1972, %v1965
    %v2274 = vpack.c.b16 %v1973, %v1966
    %v2275 = vpack.c.b16 %v1974, %v1967
    %v2276 = vpack.c.b16 %v1982, %v1975
    %v2277 = vpack.c.b16 %v1983, %v1976
    %v2278 = vpack.c.b16 %v1984, %v1977
    %v2279 = vpack.c.b16 %v1985, %v1978
    %v2280 = vpack.c.b16 %v1986, %v1979
    %v2281 = vpack.c.b16 %v1987, %v1980
    %v2282 = vpack.c.b16 %v1988, %v1981
    %v2283 = vpack.c.b16 %v1996, %v1989
    %v2284 = vpack.c.b16 %v1997, %v1990
    %v2285 = vpack.c.b16 %v1998, %v1991
    %v2286 = vpack.c.b16 %v1999, %v1992
    %v2287 = vpack.c.b16 %v2000, %v1993
    %v2288 = vpack.c.b16 %v2001, %v1994
    %v2289 = vpack.c.b16 %v2002, %v1995
    %v2290 = vpack.c.b16 %v2010, %v2003
    %v2291 = vpack.c.b16 %v2011, %v2004
    %v2292 = vpack.c.b16 %v2012, %v2005
    %v2293 = vpack.c.b16 %v2013, %v2006
    %v2294 = vpack.c.b16 %v2014, %v2007
    %v2295 = vpack.c.b16 %v2015, %v2008
    %v2296 = vpack.c.b16 %v2016, %v2009
    %v2297 = vpack.c.b16 %v2024, %v2017
    %v2298 = vpack.c.b16 %v2025, %v2018
    %v2299 = vpack.c.b16 %v2026, %v2019
    %v2300 = vpack.c.b16 %v2027, %v2020
    %v2301 = vpack.c.b16 %v2028, %v2021
    %v2302 = vpack.c.b16 %v2029, %v2022
    %v2303 = vpack.c.b16 %v2030, %v2023
    %v2304 = vpack.c.b16 %v2038, %v2031
    %v2305 = vpack.c.b16 %v2039, %v2032
    %v2306 = vpack.c.b16 %v2040, %v2033
    %v2307 = vpack.c.b16 %v2041, %v2034
    %v2308 = vpack.c.b16 %v2042, %v2035
    %v2309 = vpack.c.b16 %v2043, %v2036
    %v2310 = vpack.c.b16 %v2044, %v2037
    %v2311 = vpack.c.b16 %v2052, %v2045
    %v2312 = vpack.c.b16 %v2053, %v2046
    %v2313 = vpack.c.b16 %v2054, %v2047
    %v2314 = vpack.c.b16 %v2055, %v2048
    %v2315 = vpack.c.b16 %v2056, %v2049
    %v2316 = vpack.c.b16 %v2057, %v2050
    %v2317 = vpack.c.b16 %v2058, %v2051
    %v2318 = vpack.c.b16 %v2066, %v2059
    %v2319 = vpack.c.b16 %v2067, %v2060
    %v2320 = vpack.c.b16 %v2068, %v2061
    %v2321 = vpack.c.b16 %v2069, %v2062
    %v2322 = vpack.c.b16 %v2070, %v2063
    %v2323 = vpack.c.b16 %v2071, %v2064
    %v2324 = vpack.c.b16 %v2072, %v2065
    %v2325 = vpack.c.b16 %v2080, %v2073
    %v2326 = vpack.c.b16 %v2081, %v2074
    %v2327 = vpack.c.b16 %v2082, %v2075
    %v2328 = vpack.c.b16 %v2083, %v2076
    %v2329 = vpack.c.b16 %v2084, %v2077
    %v2330 = vpack.c.b16 %v2085, %v2078
    %v2331 = vpack.c.b16 %v2086, %v2079
    %v2332 = vpack.c.b16 %v2094, %v2087
    %v2333 = vpack.c.b16 %v2095, %v2088
    %v2334 = vpack.c.b16 %v2096, %v2089
    %v2335 = vpack.c.b16 %v2097, %v2090
    %v2336 = vpack.c.b16 %v2098, %v2091
    %v2337 = vpack.c.b16 %v2099, %v2092
    %v2338 = vpack.c.b16 %v2100, %v2093
    %v2339 = vpack.c.b16 %v2108, %v2101
    %v2340 = vpack.c.b16 %v2109, %v2102
    %v2341 = vpack.c.b16 %v2110, %v2103
    %v2342 = vpack.c.b16 %v2111, %v2104
    %v2343 = vpack.c.b16 %v2112, %v2105
    %v2344 = vpack.c.b16 %v2113, %v2106
    %v2345 = vpack.c.b16 %v2114, %v2107
    %v2346 = vpack.c.b16 %v2122, %v2115
    %v2347 = vpack.c.b16 %v2123, %v2116
    %v2348 = vpack.c.b16 %v2124, %v2117
    %v2349 = vpack.c.b16 %v2125, %v2118
    %v2350 = vpack.c.b16 %v2126, %v2119
    %v2351 = vpack.c.b16 %v2127, %v2120
    %v2352 = vpack.c.b16 %v2128, %v2121
    %2577 = vmatprep.subr.bf16.mxu0 %v2179
    %2578 = vmatpush1.bf16.msra.mxu0 %v2178
    %2579 = vmatprep.subr.bf16.mxu0 %v2172
    %2580 = vmatpush1.bf16.msra.mxu0 %v2171
    %2581 = vmatprep.subr.bf16.mxu0 %v2165
    %2582 = vmatpush1.bf16.msra.mxu0 %v2164
    %2583 = vmatprep.subr.bf16.mxu0 %v2158
    %2584 = vmatpush1.bf16.msra.mxu0 %v2157
    %2585 = vmatprep.subr.bf16.mxu0 %v2151
    %2586 = vmatpush1.bf16.msra.mxu0 %v2150
    %2587 = vmatprep.subr.bf16.mxu0 %v2144
    %2588 = vmatpush1.bf16.msra.mxu0 %v2143
    %2589 = vmatprep.subr.bf16.mxu0 %v2137
    %2590 = vmatpush1.bf16.msra.mxu0 %v2136
    %2591 = vmatprep.subr.bf16.mxu0 %v2130
    %2592 = vmatpush1.bf16.msra.mxu0 %v2129
    %2593 = vmatprep.subr.bf16.mxu0 %v2235
    %2594 = vmatpush2.bf16.msra.mxu0 %v2234
    %2595 = vmatprep.subr.bf16.mxu0 %v2228
    %2596 = vmatpush2.bf16.msra.mxu0 %v2227
    %2597 = vmatprep.subr.bf16.mxu0 %v2221
    %2598 = vmatpush2.bf16.msra.mxu0 %v2220
    %2599 = vmatprep.subr.bf16.mxu0 %v2214
    %2600 = vmatpush2.bf16.msra.mxu0 %v2213
    %2601 = vmatprep.subr.bf16.mxu0 %v2207
    %2602 = vmatpush2.bf16.msra.mxu0 %v2206
    %2603 = vmatprep.subr.bf16.mxu0 %v2200
    %2604 = vmatpush2.bf16.msra.mxu0 %v2199
    %2605 = vmatprep.subr.bf16.mxu0 %v2193
    %2606 = vmatpush2.bf16.msra.mxu0 %v2192
    %2607 = vmatprep.subr.bf16.mxu0 %v2186
    %2608 = vmatpush2.bf16.msra.mxu0 %v2185
    %2609 = vmatprep.mubr.bf16.mxu0 %v1129
    %2610 = vmatmul.mubr.bf16.gmra.mxu0 %v1128
    %v2611 = vpop.f32.mrf.mxu0
    %v2612 = vadd.f32 %v1393, %v2611
    %v2613 = vpop.f32.mrf.mxu0
    %v2614 = vadd.f32 %v1397, %v2613
    %v2615 = vpop.f32.mrf.mxu0
    %v2616 = vpop.f32.mrf.mxu0
    %2617 = vdwg.mxu0
    %2618 = vmatprep.subr.bf16.mxu0 %v2291
    %2619 = vmatpush1.bf16.msra.mxu0 %v2290
    %2620 = vmatprep.subr.bf16.mxu0 %v2284
    %2621 = vmatpush1.bf16.msra.mxu0 %v2283
    %2622 = vmatprep.subr.bf16.mxu0 %v2277
    %2623 = vmatpush1.bf16.msra.mxu0 %v2276
    %2624 = vmatprep.subr.bf16.mxu0 %v2270
    %2625 = vmatpush1.bf16.msra.mxu0 %v2269
    %2626 = vmatprep.subr.bf16.mxu0 %v2263
    %2627 = vmatpush1.bf16.msra.mxu0 %v2262
    %2628 = vmatprep.subr.bf16.mxu0 %v2256
    %2629 = vmatpush1.bf16.msra.mxu0 %v2255
    %2630 = vmatprep.subr.bf16.mxu0 %v2249
    %2631 = vmatpush1.bf16.msra.mxu0 %v2248
    %2632 = vmatprep.subr.bf16.mxu0 %v2242
    %2633 = vmatpush1.bf16.msra.mxu0 %v2241
    %2634 = vmatprep.subr.bf16.mxu0 %v2347
    %2635 = vmatpush2.bf16.msra.mxu0 %v2346
    %2636 = vmatprep.subr.bf16.mxu0 %v2340
    %2637 = vmatpush2.bf16.msra.mxu0 %v2339
    %2638 = vmatprep.subr.bf16.mxu0 %v2333
    %2639 = vmatpush2.bf16.msra.mxu0 %v2332
    %2640 = vmatprep.subr.bf16.mxu0 %v2326
    %2641 = vmatpush2.bf16.msra.mxu0 %v2325
    %2642 = vmatprep.subr.bf16.mxu0 %v2319
    %2643 = vmatpush2.bf16.msra.mxu0 %v2318
    %2644 = vmatprep.subr.bf16.mxu0 %v2312
    %2645 = vmatpush2.bf16.msra.mxu0 %v2311
    %2646 = vmatprep.subr.bf16.mxu0 %v2305
    %2647 = vmatpush2.bf16.msra.mxu0 %v2304
    %2648 = vmatprep.subr.bf16.mxu0 %v2298
    %2649 = vmatpush2.bf16.msra.mxu0 %v2297
    %2650 = vmatprep.mubr.bf16.mxu0 %v1131
    %2651 = vmatmul.mubr.bf16.gmra.mxu0 %v1130
    %v2652 = vpop.f32.mrf.mxu0
    %v2653 = vadd.f32 %v2612, %v2652
    %v2654 = vpop.f32.mrf.mxu0
    %v2655 = vadd.f32 %v2614, %v2654
    %v2656 = vpop.f32.mrf.mxu0
    %v2657 = vpop.f32.mrf.mxu0
    %2658 = vdwg.mxu0
    %2659 = vmatprep.subr.bf16.mxu0 %v2181
    %2660 = vmatpush1.bf16.msra.mxu0 %v2180
    %2661 = vmatprep.subr.bf16.mxu0 %v2174
    %2662 = vmatpush1.bf16.msra.mxu0 %v2173
    %2663 = vmatprep.subr.bf16.mxu0 %v2167
    %2664 = vmatpush1.bf16.msra.mxu0 %v2166
    %2665 = vmatprep.subr.bf16.mxu0 %v2160
    %2666 = vmatpush1.bf16.msra.mxu0 %v2159
    %2667 = vmatprep.subr.bf16.mxu0 %v2153
    %2668 = vmatpush1.bf16.msra.mxu0 %v2152
    %2669 = vmatprep.subr.bf16.mxu0 %v2146
    %2670 = vmatpush1.bf16.msra.mxu0 %v2145
    %2671 = vmatprep.subr.bf16.mxu0 %v2139
    %2672 = vmatpush1.bf16.msra.mxu0 %v2138
    %2673 = vmatprep.subr.bf16.mxu0 %v2132
    %2674 = vmatpush1.bf16.msra.mxu0 %v2131
    %2675 = vmatprep.subr.bf16.mxu0 %v2237
    %2676 = vmatpush2.bf16.msra.mxu0 %v2236
    %2677 = vmatprep.subr.bf16.mxu0 %v2230
    %2678 = vmatpush2.bf16.msra.mxu0 %v2229
    %2679 = vmatprep.subr.bf16.mxu0 %v2223
    %2680 = vmatpush2.bf16.msra.mxu0 %v2222
    %2681 = vmatprep.subr.bf16.mxu0 %v2216
    %2682 = vmatpush2.bf16.msra.mxu0 %v2215
    %2683 = vmatprep.subr.bf16.mxu0 %v2209
    %2684 = vmatpush2.bf16.msra.mxu0 %v2208
    %2685 = vmatprep.subr.bf16.mxu0 %v2202
    %2686 = vmatpush2.bf16.msra.mxu0 %v2201
    %2687 = vmatprep.subr.bf16.mxu0 %v2195
    %2688 = vmatpush2.bf16.msra.mxu0 %v2194
    %2689 = vmatprep.subr.bf16.mxu0 %v2188
    %2690 = vmatpush2.bf16.msra.mxu0 %v2187
    %2691 = vmatprep.mubr.bf16.mxu0 %v1129
    %2692 = vmatmul.mubr.bf16.gmra.mxu0 %v1128
    %v2693 = vpop.f32.mrf.mxu0
    %v2694 = vadd.f32 %v1401, %v2693
    %v2695 = vpop.f32.mrf.mxu0
    %v2696 = vadd.f32 %v1405, %v2695
    %v2697 = vpop.f32.mrf.mxu0
    %v2698 = vpop.f32.mrf.mxu0
    %2699 = vdwg.mxu0
    %2700 = vmatprep.subr.bf16.mxu0 %v2293
    %2701 = vmatpush1.bf16.msra.mxu0 %v2292
    %2702 = vmatprep.subr.bf16.mxu0 %v2286
    %2703 = vmatpush1.bf16.msra.mxu0 %v2285
    %2704 = vmatprep.subr.bf16.mxu0 %v2279
    %2705 = vmatpush1.bf16.msra.mxu0 %v2278
    %2706 = vmatprep.subr.bf16.mxu0 %v2272
    %2707 = vmatpush1.bf16.msra.mxu0 %v2271
    %2708 = vmatprep.subr.bf16.mxu0 %v2265
    %2709 = vmatpush1.bf16.msra.mxu0 %v2264
    %2710 = vmatprep.subr.bf16.mxu0 %v2258
    %2711 = vmatpush1.bf16.msra.mxu0 %v2257
    %2712 = vmatprep.subr.bf16.mxu0 %v2251
    %2713 = vmatpush1.bf16.msra.mxu0 %v2250
    %2714 = vmatprep.subr.bf16.mxu0 %v2244
    %2715 = vmatpush1.bf16.msra.mxu0 %v2243
    %2716 = vmatprep.subr.bf16.mxu0 %v2349
    %2717 = vmatpush2.bf16.msra.mxu0 %v2348
    %2718 = vmatprep.subr.bf16.mxu0 %v2342
    %2719 = vmatpush2.bf16.msra.mxu0 %v2341
    %2720 = vmatprep.subr.bf16.mxu0 %v2335
    %2721 = vmatpush2.bf16.msra.mxu0 %v2334
    %2722 = vmatprep.subr.bf16.mxu0 %v2328
    %2723 = vmatpush2.bf16.msra.mxu0 %v2327
    %2724 = vmatprep.subr.bf16.mxu0 %v2321
    %2725 = vmatpush2.bf16.msra.mxu0 %v2320
    %2726 = vmatprep.subr.bf16.mxu0 %v2314
    %2727 = vmatpush2.bf16.msra.mxu0 %v2313
    %2728 = vmatprep.subr.bf16.mxu0 %v2307
    %2729 = vmatpush2.bf16.msra.mxu0 %v2306
    %2730 = vmatprep.subr.bf16.mxu0 %v2300
    %2731 = vmatpush2.bf16.msra.mxu0 %v2299
    %2732 = vmatprep.mubr.bf16.mxu0 %v1131
    %2733 = vmatmul.mubr.bf16.gmra.mxu0 %v1130
    %v2734 = vpop.f32.mrf.mxu0
    %v2735 = vadd.f32 %v2694, %v2734
    %v2736 = vpop.f32.mrf.mxu0
    %v2737 = vadd.f32 %v2696, %v2736
    %v2738 = vpop.f32.mrf.mxu0
    %v2739 = vpop.f32.mrf.mxu0
    %2740 = vdwg.mxu0
    %2741 = vmatprep.subr.bf16.mxu0 %v2183
    %2742 = vmatpush1.bf16.msra.mxu0 %v2182
    %2743 = vmatprep.subr.bf16.mxu0 %v2176
    %2744 = vmatpush1.bf16.msra.mxu0 %v2175
    %2745 = vmatprep.subr.bf16.mxu0 %v2169
    %2746 = vmatpush1.bf16.msra.mxu0 %v2168
    %2747 = vmatprep.subr.bf16.mxu0 %v2162
    %2748 = vmatpush1.bf16.msra.mxu0 %v2161
    %2749 = vmatprep.subr.bf16.mxu0 %v2155
    %2750 = vmatpush1.bf16.msra.mxu0 %v2154
    %2751 = vmatprep.subr.bf16.mxu0 %v2148
    %2752 = vmatpush1.bf16.msra.mxu0 %v2147
    %2753 = vmatprep.subr.bf16.mxu0 %v2141
    %2754 = vmatpush1.bf16.msra.mxu0 %v2140
    %2755 = vmatprep.subr.bf16.mxu0 %v2134
    %2756 = vmatpush1.bf16.msra.mxu0 %v2133
    %2757 = vmatprep.subr.bf16.mxu0 %v2239
    %2758 = vmatpush2.bf16.msra.mxu0 %v2238
    %2759 = vmatprep.subr.bf16.mxu0 %v2232
    %2760 = vmatpush2.bf16.msra.mxu0 %v2231
    %2761 = vmatprep.subr.bf16.mxu0 %v2225
    %2762 = vmatpush2.bf16.msra.mxu0 %v2224
    %2763 = vmatprep.subr.bf16.mxu0 %v2218
    %2764 = vmatpush2.bf16.msra.mxu0 %v2217
    %2765 = vmatprep.subr.bf16.mxu0 %v2211
    %2766 = vmatpush2.bf16.msra.mxu0 %v2210
    %2767 = vmatprep.subr.bf16.mxu0 %v2204
    %2768 = vmatpush2.bf16.msra.mxu0 %v2203
    %2769 = vmatprep.subr.bf16.mxu0 %v2197
    %2770 = vmatpush2.bf16.msra.mxu0 %v2196
    %2771 = vmatprep.subr.bf16.mxu0 %v2190
    %2772 = vmatpush2.bf16.msra.mxu0 %v2189
    %2773 = vmatprep.mubr.bf16.mxu0 %v1129
    %2774 = vmatmul.mubr.bf16.gmra.mxu0 %v1128
    %v2775 = vpop.f32.mrf.mxu0
    %v2776 = vadd.f32 %v1409, %v2775
    %v2777 = vpop.f32.mrf.mxu0
    %v2778 = vadd.f32 %v1413, %v2777
    %v2779 = vpop.f32.mrf.mxu0
    %v2780 = vpop.f32.mrf.mxu0
    %2781 = vdwg.mxu0
    %2782 = vmatprep.subr.bf16.mxu0 %v2295
    %2783 = vmatpush1.bf16.msra.mxu0 %v2294
    %2784 = vmatprep.subr.bf16.mxu0 %v2288
    %2785 = vmatpush1.bf16.msra.mxu0 %v2287
    %2786 = vmatprep.subr.bf16.mxu0 %v2281
    %2787 = vmatpush1.bf16.msra.mxu0 %v2280
    %2788 = vmatprep.subr.bf16.mxu0 %v2274
    %2789 = vmatpush1.bf16.msra.mxu0 %v2273
    %2790 = vmatprep.subr.bf16.mxu0 %v2267
    %2791 = vmatpush1.bf16.msra.mxu0 %v2266
    %2792 = vmatprep.subr.bf16.mxu0 %v2260
    %2793 = vmatpush1.bf16.msra.mxu0 %v2259
    %2794 = vmatprep.subr.bf16.mxu0 %v2253
    %2795 = vmatpush1.bf16.msra.mxu0 %v2252
    %2796 = vmatprep.subr.bf16.mxu0 %v2246
    %2797 = vmatpush1.bf16.msra.mxu0 %v2245
    %2798 = vmatprep.subr.bf16.mxu0 %v2351
    %2799 = vmatpush2.bf16.msra.mxu0 %v2350
    %2800 = vmatprep.subr.bf16.mxu0 %v2344
    %2801 = vmatpush2.bf16.msra.mxu0 %v2343
    %2802 = vmatprep.subr.bf16.mxu0 %v2337
    %2803 = vmatpush2.bf16.msra.mxu0 %v2336
    %2804 = vmatprep.subr.bf16.mxu0 %v2330
    %2805 = vmatpush2.bf16.msra.mxu0 %v2329
    %2806 = vmatprep.subr.bf16.mxu0 %v2323
    %2807 = vmatpush2.bf16.msra.mxu0 %v2322
    %2808 = vmatprep.subr.bf16.mxu0 %v2316
    %2809 = vmatpush2.bf16.msra.mxu0 %v2315
    %2810 = vmatprep.subr.bf16.mxu0 %v2309
    %2811 = vmatpush2.bf16.msra.mxu0 %v2308
    %2812 = vmatprep.subr.bf16.mxu0 %v2302
    %2813 = vmatpush2.bf16.msra.mxu0 %v2301
    %2814 = vmatprep.mubr.bf16.mxu0 %v1131
    %2815 = vmatmul.mubr.bf16.gmra.mxu0 %v1130
    %v2816 = vpop.f32.mrf.mxu0
    %v2817 = vadd.f32 %v2776, %v2816
    %v2818 = vpop.f32.mrf.mxu0
    %v2819 = vadd.f32 %v2778, %v2818
    %v2820 = vpop.f32.mrf.mxu0
    %v2821 = vpop.f32.mrf.mxu0
    %2822 = vdwg.mxu0
    %2823 = vmatprep.subr.bf16.mxu0 0
    %2824 = vmatpush1.bf16.msra.mxu0 %v2184
    %2825 = vmatprep.subr.bf16.mxu0 0
    %2826 = vmatpush1.bf16.msra.mxu0 %v2177
    %2827 = vmatprep.subr.bf16.mxu0 0
    %2828 = vmatpush1.bf16.msra.mxu0 %v2170
    %2829 = vmatprep.subr.bf16.mxu0 0
    %2830 = vmatpush1.bf16.msra.mxu0 %v2163
    %2831 = vmatprep.subr.bf16.mxu0 0
    %2832 = vmatpush1.bf16.msra.mxu0 %v2156
    %2833 = vmatprep.subr.bf16.mxu0 0
    %2834 = vmatpush1.bf16.msra.mxu0 %v2149
    %2835 = vmatprep.subr.bf16.mxu0 0
    %2836 = vmatpush1.bf16.msra.mxu0 %v2142
    %2837 = vmatprep.subr.bf16.mxu0 0
    %2838 = vmatpush1.bf16.msra.mxu0 %v2135
    %2839 = vmatprep.subr.bf16.mxu0 0
    %2840 = vmatpush2.bf16.msra.mxu0 %v2240
    %2841 = vmatprep.subr.bf16.mxu0 0
    %2842 = vmatpush2.bf16.msra.mxu0 %v2233
    %2843 = vmatprep.subr.bf16.mxu0 0
    %2844 = vmatpush2.bf16.msra.mxu0 %v2226
    %2845 = vmatprep.subr.bf16.mxu0 0
    %2846 = vmatpush2.bf16.msra.mxu0 %v2219
    %2847 = vmatprep.subr.bf16.mxu0 0
    %2848 = vmatpush2.bf16.msra.mxu0 %v2212
    %2849 = vmatprep.subr.bf16.mxu0 0
    %2850 = vmatpush2.bf16.msra.mxu0 %v2205
    %2851 = vmatprep.subr.bf16.mxu0 0
    %2852 = vmatpush2.bf16.msra.mxu0 %v2198
    %2853 = vmatprep.subr.bf16.mxu0 0
    %2854 = vmatpush2.bf16.msra.mxu0 %v2191
    %2855 = vmatprep.mubr.bf16.mxu0 %v1129
    %2856 = vmatmul.mubr.bf16.gmra.mxu0 %v1128
    %v2857 = vpop.f32.mrf.mxu0
    %v2858 = vadd.f32 %v1417, %v2857
    %v2859 = vpop.f32.mrf.mxu0
    %v2860 = vpop.f32.mrf.mxu0
    %v2861 = vpop.f32.mrf.mxu0
    %2862 = vdwg.mxu0
    %2863 = vmatprep.subr.bf16.mxu0 0
    %2864 = vmatpush1.bf16.msra.mxu0 %v2296
    %2865 = vmatprep.subr.bf16.mxu0 0
    %2866 = vmatpush1.bf16.msra.mxu0 %v2289
    %2867 = vmatprep.subr.bf16.mxu0 0
    %2868 = vmatpush1.bf16.msra.mxu0 %v2282
    %2869 = vmatprep.subr.bf16.mxu0 0
    %2870 = vmatpush1.bf16.msra.mxu0 %v2275
    %2871 = vmatprep.subr.bf16.mxu0 0
    %2872 = vmatpush1.bf16.msra.mxu0 %v2268
    %2873 = vmatprep.subr.bf16.mxu0 0
    %2874 = vmatpush1.bf16.msra.mxu0 %v2261
    %2875 = vmatprep.subr.bf16.mxu0 0
    %2876 = vmatpush1.bf16.msra.mxu0 %v2254
    %2877 = vmatprep.subr.bf16.mxu0 0
    %2878 = vmatpush1.bf16.msra.mxu0 %v2247
    %2879 = vmatprep.subr.bf16.mxu0 0
    %2880 = vmatpush2.bf16.msra.mxu0 %v2352
    %2881 = vmatprep.subr.bf16.mxu0 0
    %2882 = vmatpush2.bf16.msra.mxu0 %v2345
    %2883 = vmatprep.subr.bf16.mxu0 0
    %2884 = vmatpush2.bf16.msra.mxu0 %v2338
    %2885 = vmatprep.subr.bf16.mxu0 0
    %2886 = vmatpush2.bf16.msra.mxu0 %v2331
    %2887 = vmatprep.subr.bf16.mxu0 0
    %2888 = vmatpush2.bf16.msra.mxu0 %v2324
    %2889 = vmatprep.subr.bf16.mxu0 0
    %2890 = vmatpush2.bf16.msra.mxu0 %v2317
    %2891 = vmatprep.subr.bf16.mxu0 0
    %2892 = vmatpush2.bf16.msra.mxu0 %v2310
    %2893 = vmatprep.subr.bf16.mxu0 0
    %2894 = vmatpush2.bf16.msra.mxu0 %v2303
    %2895 = vmatprep.mubr.bf16.mxu0 %v1131
    %2896 = vmatmul.mubr.bf16.gmra.mxu0 %v1130
    %v2897 = vpop.f32.mrf.mxu0
    %v2898 = vadd.f32 %v2858, %v2897
    %v2899 = vpop.f32.mrf.mxu0
    %v2900 = vpop.f32.mrf.mxu0
    %v2901 = vpop.f32.mrf.mxu0
    %2902 = vdwg.mxu0
    %v2903 = vtanh.pop %v2653
    %v2904 = vtanh.pop %v2655
    %v2905 = vtanh.pop %v2735
    %v2906 = vtanh.pop %v2737
    %v2907 = vtanh.pop %v2817
    %v2908 = vtanh.pop %v2819
    %v2909 = vtanh.pop %v2898
    %2910 = vst [vmem:[%s8] sm:$0xff] %v2903
    %2911 = vst [vmem:[%s8 + $0x8] sm:$0xff] %v2904
    %2912 = vst [vmem:[%s8 + $0x10] sm:$0xff] %v2905
    %2913 = vst [vmem:[%s8 + $0x18] sm:$0xff] %v2906
    %2914 = vst [vmem:[%s8 + $0x20] sm:$0xff] %v2907
    %2915 = vst [vmem:[%s8 + $0x28] sm:$0xff] %v2908
    %2916 = vst [vmem:[%s8 + $0x30] sm:$0xff] %v2909
    // Predicated region
    $region54: #{generator_forward.1} parent=1 // pred_check
      _
    $region55: #{generator_forward.1} parent=1 // pred_check_branch
      %2918 = sbr.rel (0) target = $region57
    $region56: #{generator_forward.1} parent=1 // pred_region
      _
    $region57: #{generator_forward.1} parent=1 // pred_fallthru
      _
    // Predicated region
    $region58: #{generator_forward.1} parent=1 // pred_check
      _
    $region59: #{generator_forward.1} parent=1 // pred_check_branch
      %2920 = sbr.rel (0) target = $region61
    $region60: #{generator_forward.1} parent=1 // pred_region
      _
    $region61: #{generator_forward.1} parent=1 // pred_fallthru
      _
    %2921 = vsyncpa [#allocation3], 1
    %2922 = vsyncpa [#allocation5], 1
    %2923 = vsyncpa [#allocation8], 1

</llo_original>
